<compile_context>
chip_gen: v7x
topology: tpu7x:2x2x1
jax: 0.10.0
libtpu: 0.0.40
codegen_flags: <defaults>
</compile_context>

<pallas_src>
import jax
import jax.numpy as jnp
from jax.experimental import pallas as pl
from jax.experimental.pallas import tpu as pltpu


def _round_up(x, m):
    return (x + m - 1) // m * m


def _fused_model_kernel(x_ref, bw_ref, bb_ref, hw_ref, hb_ref, o_ref, acc_ref):
    """One K-tile step of the fused backbone-matmul + head-Linear kernel.

    acc_ref accumulates x @ backbone_w in f32 across the K grid axis; on the
    last tile we add the backbone bias and apply the head Linear in-kernel.
    """
    k = pl.program_id(0)

    @pl.when(k == 0)
    def _():
        acc_ref[...] = jnp.zeros_like(acc_ref)

    # bf16 operands, f32 accumulation on the MXU.
    acc_ref[...] += jnp.dot(
        x_ref[...], bw_ref[...], preferred_element_type=jnp.float32
    )

    @pl.when(k == pl.num_programs(0) - 1)
    def _():
        feats = acc_ref[...] + bb_ref[...]  # f32, lane-dense [N_pad, M_pad]
        out = jnp.dot(
            feats.astype(hw_ref.dtype), hw_ref[...],
            preferred_element_type=jnp.float32,
        )
        o_ref[...] = (out + hb_ref[...]).astype(o_ref.dtype)


def fused_forward(x_flat, backbone_w, backbone_b, head_w, head_b, *, max_tk=2048):
    """[N, K] -> [N, output_dim] in a single fused, K-tiled pallas_call."""
    n, k_in = x_flat.shape
    feat_dim = backbone_w.shape[1]
    out_dim = head_w.shape[1]

    # --- pad to lane/sublane-dense, MXU-friendly shapes ---------------------
    n_pad = _round_up(max(n, 16), 16)          # bf16 sublane pack = 16 rows
    # Adaptive K tile: collapse small inputs to one grid step, cap large ones
    # at max_tk so the double-buffered weight tiles stay small in VMEM.
    tk = min(max_tk, _round_up(k_in, 256))
    k_pad = _round_up(k_in, tk)                # K split into tk-sized tiles
    m_pad = _round_up(feat_dim, 128)           # 1000 -> 1024
    o_pad = _round_up(out_dim, 128)            # 2 -> 128 (unmasked lane-dense)

    xb = jnp.pad(x_flat, ((0, n_pad - n), (0, k_pad - k_in))).astype(jnp.bfloat16)
    bw = jnp.pad(
        backbone_w, ((0, k_pad - k_in), (0, m_pad - feat_dim))
    ).astype(jnp.bfloat16)
    bb = jnp.pad(backbone_b, (0, m_pad - feat_dim)).reshape(1, m_pad).astype(jnp.float32)
    hw = jnp.pad(
        head_w, ((0, m_pad - feat_dim), (0, o_pad - out_dim))
    ).astype(jnp.bfloat16)
    hb = jnp.pad(head_b, (0, o_pad - out_dim)).reshape(1, o_pad).astype(jnp.float32)

    grid = (k_pad // tk,)

    # VMEM budget (bf16 inputs double-buffered + f32 acc/out) for tk=2048,
    # m_pad=1024: ~8.5 MiB — well under the 16/32 MiB scoped defaults and
    # v7x's 64 MiB physical VMEM.
    out_padded = pl.pallas_call(
        _fused_model_kernel,
        out_shape=jax.ShapeDtypeStruct((n_pad, o_pad), jnp.float32),
        grid_spec=pltpu.PrefetchScalarGridSpec(
            num_scalar_prefetch=0,
            grid=grid,
            in_specs=[
                pl.BlockSpec((n_pad, tk), lambda k: (0, k)),     # x K-tile
                pl.BlockSpec((tk, m_pad), lambda k: (k, 0)),     # backbone_w K-tile
                pl.BlockSpec((1, m_pad), lambda k: (0, 0)),      # backbone_b (resident)
                pl.BlockSpec((m_pad, o_pad), lambda k: (0, 0)),  # head_w (resident)
                pl.BlockSpec((1, o_pad), lambda k: (0, 0)),      # head_b (resident)
            ],
            out_specs=pl.BlockSpec((n_pad, o_pad), lambda k: (0, 0)),
            scratch_shapes=[pltpu.VMEM((n_pad, m_pad), jnp.float32)],
        ),
        compiler_params=pltpu.CompilerParams(
            dimension_semantics=("arbitrary",),  # K is a reduction axis
            vmem_limit_bytes=32 * 1024 * 1024,
        ),
    )(xb, bw, bb, hw, hb)

    return out_padded[:n, :out_dim]


def init_params(key, in_features, feat_dim=1000, output_dim=2, dtype=jnp.float32):
    """Deterministic synthetic parameters (not a checkpoint load)."""
    k1, k2, k3, k4 = jax.random.split(key, 4)
    backbone_w = (jax.random.normal(k1, (in_features, feat_dim), dtype)
                  * (1.0 / jnp.sqrt(in_features)))
    backbone_b = jax.random.normal(k2, (feat_dim,), dtype) * 0.01
    head_w = (jax.random.normal(k3, (feat_dim, output_dim), dtype)
              * (1.0 / jnp.sqrt(feat_dim)))
    head_b = jax.random.normal(k4, (output_dim,), dtype) * 0.01
    return backbone_w, backbone_b, head_w, head_b


@jax.jit
def my_model_forward(x_nchw, backbone_w, backbone_b, head_w, head_b):
    n = x_nchw.shape[0]
    # glue: flatten NCHW image to [N, C*H*W] (plain JAX reshape)
    x_flat = x_nchw.reshape(n, -1)
    # fused backbone stand-in + Linear(1000, output_dim) head, one pallas_call
    return fused_forward(x_flat, backbone_w, backbone_b, head_w, head_b)


if __name__ == "__main__":
    key = jax.random.PRNGKey(0)
    k_x, k_p = jax.random.split(key)

    # Small image batch consistent with an image-classification backbone input.
    N, C, H, W = 2, 3, 16, 16
    x = jax.random.normal(k_x, (N, C, H, W), jnp.float32)

    in_features = C * H * W
    backbone_w, backbone_b, head_w, head_b = init_params(
        k_p, in_features, feat_dim=1000, output_dim=2
    )

    n_params = sum(int(p.size) for p in (backbone_w, backbone_b, head_w, head_b))
    print("parameters=", n_params)

    out = my_model_forward(x, backbone_w, backbone_b, head_w, head_b)
    out = jax.block_until_ready(out)
    assert out.shape == (N, 2), out.shape

    # Reference with the same bf16 operand rounding the kernel uses
    # (accumulation stays f32 in both).
    x_flat = x.reshape(N, -1)
    xb = x_flat.astype(jnp.bfloat16).astype(jnp.float32)
    bwb = backbone_w.astype(jnp.bfloat16).astype(jnp.float32)
    feats_ref = xb @ bwb + backbone_b
    hwb = head_w.astype(jnp.bfloat16).astype(jnp.float32)
    ref = feats_ref.astype(jnp.bfloat16).astype(jnp.float32) @ hwb + head_b
    assert jnp.allclose(out, ref, atol=1e-2, rtol=1e-2), (out, ref)

    print("KERNEL_OK")
</pallas_src>

<mosaic_0001>
module attributes {stable_mosaic.version = 11 : i64} {
  func.func @_fused_model_kernel(%arg0: i32, %arg1: memref<16x768xbf16, #tpu.memory_space<vmem>>, %arg2: memref<768x1024xbf16, #tpu.memory_space<vmem>>, %arg3: memref<1x1024xf32, #tpu.memory_space<vmem>>, %arg4: memref<1024x128xbf16, #tpu.memory_space<vmem>>, %arg5: memref<1x128xf32, #tpu.memory_space<vmem>>, %arg6: memref<16x128xf32, #tpu.memory_space<vmem>>, %arg7: memref<16x1024xf32, #tpu.memory_space<vmem>>) attributes {dimension_semantics = [#tpu.dimension_semantics<arbitrary>], iteration_bounds = array<i64: 1>, scalar_prefetch = 0 : i64, scratch_operands = 1 : i64, tpu.core_type = #tpu.core_type<tc>, window_params = [{transform_indices = @transform_0, window_bounds = array<i64: 16, 768>}, {transform_indices = @transform_1, window_bounds = array<i64: 768, 1024>}, {pipeline_mode = #tpu.pipeline_mode<synchronous>, transform_indices = @transform_2, window_bounds = array<i64: 1, 1024>}, {pipeline_mode = #tpu.pipeline_mode<synchronous>, transform_indices = @transform_3, window_bounds = array<i64: 1024, 128>}, {pipeline_mode = #tpu.pipeline_mode<synchronous>, transform_indices = @transform_4, window_bounds = array<i64: 1, 128>}, {pipeline_mode = #tpu.pipeline_mode<synchronous>, transform_indices = @transform_5, window_bounds = array<i64: 16, 128>}]} {
    %c0_i32 = arith.constant 0 : i32
    %0 = arith.cmpi eq, %arg0, %c0_i32 : i32
    %1 = arith.extui %0 : i1 to i32
    %c0_i32_0 = arith.constant 0 : i32
    %2 = arith.cmpi ne, %1, %c0_i32_0 : i32
    scf.if %2 {
      %cst_10 = arith.constant 0.000000e+00 : f32
      %12 = vector.broadcast %cst_10 : f32 to vector<16x1024xf32>
      %c0_11 = arith.constant 0 : index
      %c0_12 = arith.constant 0 : index
      %13 = vector.load %arg7[%c0_11, %c0_12] : memref<16x1024xf32, #tpu.memory_space<vmem>>, vector<16x1024xf32>
      tpu.vector_store %arg7[%c0_11, %c0_12], %12 {strides = array<i32>} : memref<16x1024xf32, #tpu.memory_space<vmem>>, vector<16x1024xf32>,
    } else {
    }
    %c0 = arith.constant 0 : index
    %c0_1 = arith.constant 0 : index
    %3 = vector.load %arg7[%c0, %c0_1] : memref<16x1024xf32, #tpu.memory_space<vmem>>, vector<16x1024xf32>
    %c0_2 = arith.constant 0 : index
    %c0_3 = arith.constant 0 : index
    %4 = vector.load %arg1[%c0_2, %c0_3] : memref<16x768xbf16, #tpu.memory_space<vmem>>, vector<16x768xbf16>
    %c0_4 = arith.constant 0 : index
    %c0_5 = arith.constant 0 : index
    %5 = vector.load %arg2[%c0_4, %c0_5] : memref<768x1024xbf16, #tpu.memory_space<vmem>>, vector<768x1024xbf16>
    %cst = arith.constant dense<0.000000e+00> : vector<16x1024xf32>
    %6 = tpu.matmul %4, %5, %cst {dimension_numbers = #tpu.dot_dimension_numbers<[1], [0], [0], [1], [0, 0, 1, 1], [], []>} : vector<16x768xbf16>, vector<768x1024xbf16>, vector<16x1024xf32> -> vector<16x1024xf32>
    %7 = arith.addf %3, %6 : vector<16x1024xf32>
    %c0_6 = arith.constant 0 : index
    %c0_7 = arith.constant 0 : index
    %8 = vector.load %arg7[%c0_6, %c0_7] : memref<16x1024xf32, #tpu.memory_space<vmem>>, vector<16x1024xf32>
    tpu.vector_store %arg7[%c0_6, %c0_7], %7 {strides = array<i32>} : memref<16x1024xf32, #tpu.memory_space<vmem>>, vector<16x1024xf32>,
    %c0_i32_8 = arith.constant 0 : i32
    %9 = arith.cmpi eq, %arg0, %c0_i32_8 : i32
    %10 = arith.extui %9 : i1 to i32
    %c0_i32_9 = arith.constant 0 : i32
    %11 = arith.cmpi ne, %10, %c0_i32_9 : i32
    scf.if %11 {
      %c0_10 = arith.constant 0 : index
      %c0_11 = arith.constant 0 : index
      %12 = vector.load %arg7[%c0_10, %c0_11] : memref<16x1024xf32, #tpu.memory_space<vmem>>, vector<16x1024xf32>
      %c0_12 = arith.constant 0 : index
      %c0_13 = arith.constant 0 : index
      %13 = vector.load %arg3[%c0_12, %c0_13] : memref<1x1024xf32, #tpu.memory_space<vmem>>, vector<1x1024xf32>
      %14 = vector.broadcast %13 : vector<1x1024xf32> to vector<16x1024xf32>
      %15 = arith.addf %12, %14 : vector<16x1024xf32>
      %16 = arith.truncf %15 : vector<16x1024xf32> to vector<16x1024xbf16>
      %c0_14 = arith.constant 0 : index
      %c0_15 = arith.constant 0 : index
      %17 = vector.load %arg4[%c0_14, %c0_15] : memref<1024x128xbf16, #tpu.memory_space<vmem>>, vector<1024x128xbf16>
      %cst_16 = arith.constant dense<0.000000e+00> : vector<16x128xf32>
      %18 = tpu.matmul %16, %17, %cst_16 {dimension_numbers = #tpu.dot_dimension_numbers<[1], [0], [0], [1], [0, 0, 1, 1], [], []>} : vector<16x1024xbf16>, vector<1024x128xbf16>, vector<16x128xf32> -> vector<16x128xf32>
      %c0_17 = arith.constant 0 : index
      %c0_18 = arith.constant 0 : index
      %19 = vector.load %arg5[%c0_17, %c0_18] : memref<1x128xf32, #tpu.memory_space<vmem>>, vector<1x128xf32>
      %20 = vector.broadcast %19 : vector<1x128xf32> to vector<16x128xf32>
      %21 = arith.addf %18, %20 : vector<16x128xf32>
      %c0_19 = arith.constant 0 : index
      %c0_20 = arith.constant 0 : index
      %22 = vector.load %arg6[%c0_19, %c0_20] : memref<16x128xf32, #tpu.memory_space<vmem>>, vector<16x128xf32>
      tpu.vector_store %arg6[%c0_19, %c0_20], %21 {strides = array<i32>} : memref<16x128xf32, #tpu.memory_space<vmem>>, vector<16x128xf32>,
    } else {
    }
    return
  }
  func.func @transform_0(%arg0: i32) -> (i32, i32) {
    %c0_i32 = arith.constant 0 : i32
    %c0_i32_0 = arith.constant 0 : i32
    return %c0_i32, %arg0 : i32, i32
  }
  func.func @transform_1(%arg0: i32) -> (i32, i32) {
    %c0_i32 = arith.constant 0 : i32
    %c0_i32_0 = arith.constant 0 : i32
    return %arg0, %c0_i32 : i32, i32
  }
  func.func @transform_2(%arg0: i32) -> (i32, i32) {
    %c0_i32 = arith.constant 0 : i32
    %c0_i32_0 = arith.constant 0 : i32
    %c0_i32_1 = arith.constant 0 : i32
    return %c0_i32, %c0_i32_0 : i32, i32
  }
  func.func @transform_3(%arg0: i32) -> (i32, i32) {
    %c0_i32 = arith.constant 0 : i32
    %c0_i32_0 = arith.constant 0 : i32
    %c0_i32_1 = arith.constant 0 : i32
    return %c0_i32, %c0_i32_0 : i32, i32
  }
  func.func @transform_4(%arg0: i32) -> (i32, i32) {
    %c0_i32 = arith.constant 0 : i32
    %c0_i32_0 = arith.constant 0 : i32
    %c0_i32_1 = arith.constant 0 : i32
    return %c0_i32, %c0_i32_0 : i32, i32
  }
  func.func @transform_5(%arg0: i32) -> (i32, i32) {
    %c0_i32 = arith.constant 0 : i32
    %c0_i32_0 = arith.constant 0 : i32
    %c0_i32_1 = arith.constant 0 : i32
    return %c0_i32, %c0_i32_0 : i32, i32
  }
}

</mosaic_0001>

<llo_original>
// kernel: my_model_forward.1
$region0: #{my_model_forward.1}
  #allocation0 [shape = 'u32[]', space=smem, size = 0x4, offset = 0x4, fixed_abs, tag = 'smem constant byte address 0x4 - core index']
  #allocation1 [shape = 'u32[144,128]{1,0:T(1,128)}', space=vmem, size = 0x12000, scoped, tag = 'internal scratch']
  #allocation2 [shape = 'f32[16,1024]{1,0:T(8,128)}', space=vmem, size = 0x10000, scoped, tag = 'scratch operand']
  %s0 = inlined_call_operand.vmem [shape: bf16[16,768], index: 0, kind: input, shape index: {}]
  %s1 = inlined_call_operand.vmem [shape: bf16[768,1024], index: 1, kind: input, shape index: {}]
  %s2 = inlined_call_operand.vmem [shape: f32[1,1024], index: 2, kind: input, shape index: {}]
  %s3 = inlined_call_operand.vmem [shape: bf16[1024,128], index: 3, kind: input, shape index: {}]
  %s4 = inlined_call_operand.vmem [shape: f32[1,128], index: 4, kind: input, shape index: {}]
  %s5 = inlined_call_operand.vmem [shape: f32[16,128], index: 5, kind: output, shape index: {}]
  %s6 = sld [smem:[#allocation0]]
  $region38: #{my_model_forward.1} parent=0
    _
  %s8 = ssub.s32 1, %s6
  %s9 = scalar_select 0, %s8, %s6
  // Predicated region
  $region2: #{my_model_forward.1} parent=0 // pred_check
    _
  $region3: #{my_model_forward.1} parent=0 // pred_check_branch
    %11 = sbr.rel (0) target = $region5
  $region4: #{my_model_forward.1} parent=0 // pred_region
    _
  $region5: #{my_model_forward.1} parent=0 // pred_fallthru
    _
  // Predicated region
  $region6: #{my_model_forward.1} parent=0 // pred_check
    _
  $region7: #{my_model_forward.1} parent=0 // pred_check_branch
    %13 = sbr.rel (0) target = $region9
  $region8: #{my_model_forward.1} parent=0 // pred_region
    _
  $region9: #{my_model_forward.1} parent=0 // pred_fallthru
    _
  // Predicated region
  $region10: #{my_model_forward.1} parent=0 // pred_check
    _
  $region11: #{my_model_forward.1} parent=0 // pred_check_branch
    %15 = sbr.rel (0) target = $region13
  $region12: #{my_model_forward.1} parent=0 // pred_region
    _
  $region13: #{my_model_forward.1} parent=0 // pred_fallthru
    _
  // Predicated region
  $region14: #{my_model_forward.1} parent=0 // pred_check
    _
  $region15: #{my_model_forward.1} parent=0 // pred_check_branch
    %17 = sbr.rel (0) target = $region17
  $region16: #{my_model_forward.1} parent=0 // pred_region
    _
  $region17: #{my_model_forward.1} parent=0 // pred_fallthru
    _
  // Predicated region
  $region18: #{my_model_forward.1} parent=0 // pred_check
    _
  $region19: #{my_model_forward.1} parent=0 // pred_check_branch
    %19 = sbr.rel (0) target = $region21
  $region20: #{my_model_forward.1} parent=0 // pred_region
    _
  $region21: #{my_model_forward.1} parent=0 // pred_fallthru
    _
  %p21 = scmp.eq.s32.totalorder 0, 0
  // Predicated region
  $region22: #{my_model_forward.1} parent=0 // pred_check
    %p22 = pneg %p21
  $region23: #{my_model_forward.1} parent=0 // pred_check_branch
    %24 = sbr.rel (%p22) target = $region25
  $region24: #{my_model_forward.1} parent=0 // pred_region
    %25 = vst [vmem:[#allocation2] sm:$0xff] 0.0
    %26 = vst [vmem:[#allocation2 + $0x8] sm:$0xff] 0.0
    %27 = vst [vmem:[#allocation2 + $0x10] sm:$0xff] 0.0
    %28 = vst [vmem:[#allocation2 + $0x18] sm:$0xff] 0.0
    %29 = vst [vmem:[#allocation2 + $0x20] sm:$0xff] 0.0
    %30 = vst [vmem:[#allocation2 + $0x28] sm:$0xff] 0.0
    %31 = vst [vmem:[#allocation2 + $0x30] sm:$0xff] 0.0
    %32 = vst [vmem:[#allocation2 + $0x38] sm:$0xff] 0.0
    %33 = vst [vmem:[#allocation2 + $0x40] sm:$0xff] 0.0
    %34 = vst [vmem:[#allocation2 + $0x48] sm:$0xff] 0.0
    %35 = vst [vmem:[#allocation2 + $0x50] sm:$0xff] 0.0
    %36 = vst [vmem:[#allocation2 + $0x58] sm:$0xff] 0.0
    %37 = vst [vmem:[#allocation2 + $0x60] sm:$0xff] 0.0
    %38 = vst [vmem:[#allocation2 + $0x68] sm:$0xff] 0.0
    %39 = vst [vmem:[#allocation2 + $0x70] sm:$0xff] 0.0
    %40 = vst [vmem:[#allocation2 + $0x78] sm:$0xff] 0.0
  $region25: #{my_model_forward.1} parent=0 // pred_fallthru
    _
  %v41 = vld [vmem:[#allocation2] sm:$0xff]
  %v42 = vld [vmem:[#allocation2 + $0x8] sm:$0xff]
  %v43 = vld [vmem:[#allocation2 + $0x10] sm:$0xff]
  %v44 = vld [vmem:[#allocation2 + $0x18] sm:$0xff]
  %v45 = vld [vmem:[#allocation2 + $0x20] sm:$0xff]
  %v46 = vld [vmem:[#allocation2 + $0x28] sm:$0xff]
  %v47 = vld [vmem:[#allocation2 + $0x30] sm:$0xff]
  %v48 = vld [vmem:[#allocation2 + $0x38] sm:$0xff]
  %v49 = vld [vmem:[#allocation2 + $0x40] sm:$0xff]
  %v50 = vld [vmem:[#allocation2 + $0x48] sm:$0xff]
  %v51 = vld [vmem:[#allocation2 + $0x50] sm:$0xff]
  %v52 = vld [vmem:[#allocation2 + $0x58] sm:$0xff]
  %v53 = vld [vmem:[#allocation2 + $0x60] sm:$0xff]
  %v54 = vld [vmem:[#allocation2 + $0x68] sm:$0xff]
  %v55 = vld [vmem:[#allocation2 + $0x70] sm:$0xff]
  %v56 = vld [vmem:[#allocation2 + $0x78] sm:$0xff]
  %v57 = vld [vmem:[%s0] sm:$0xff]
  %v58 = vld [vmem:[%s0 + $0x8] sm:$0xff]
  %v59 = vld [vmem:[%s0 + $0x10] sm:$0xff]
  %v60 = vld [vmem:[%s0 + $0x18] sm:$0xff]
  %v61 = vld [vmem:[%s0 + $0x20] sm:$0xff]
  %v62 = vld [vmem:[%s0 + $0x28] sm:$0xff]
  %v63 = vld [vmem:[%s1] sm:$0xff]
  %v64 = vld [vmem:[%s1 + $0x8] sm:$0xff]
  %v65 = vld [vmem:[%s1 + $0x10] sm:$0xff]
  %v66 = vld [vmem:[%s1 + $0x18] sm:$0xff]
  %v67 = vld [vmem:[%s1 + $0x20] sm:$0xff]
  %v68 = vld [vmem:[%s1 + $0x28] sm:$0xff]
  %v69 = vld [vmem:[%s1 + $0x30] sm:$0xff]
  %v70 = vld [vmem:[%s1 + $0x38] sm:$0xff]
  %v71 = vld [vmem:[%s1 + $0x40] sm:$0xff]
  %v72 = vld [vmem:[%s1 + $0x48] sm:$0xff]
  %v73 = vld [vmem:[%s1 + $0x50] sm:$0xff]
  %v74 = vld [vmem:[%s1 + $0x58] sm:$0xff]
  %v75 = vld [vmem:[%s1 + $0x60] sm:$0xff]
  %v76 = vld [vmem:[%s1 + $0x68] sm:$0xff]
  %v77 = vld [vmem:[%s1 + $0x70] sm:$0xff]
  %v78 = vld [vmem:[%s1 + $0x78] sm:$0xff]
  %v79 = vld [vmem:[%s1 + $0x80] sm:$0xff]
  %v80 = vld [vmem:[%s1 + $0x88] sm:$0xff]
  %v81 = vld [vmem:[%s1 + $0x90] sm:$0xff]
  %v82 = vld [vmem:[%s1 + $0x98] sm:$0xff]
  %v83 = vld [vmem:[%s1 + $0xa0] sm:$0xff]
  %v84 = vld [vmem:[%s1 + $0xa8] sm:$0xff]
  %v85 = vld [vmem:[%s1 + $0xb0] sm:$0xff]
  %v86 = vld [vmem:[%s1 + $0xb8] sm:$0xff]
  %v87 = vld [vmem:[%s1 + $0xc0] sm:$0xff]
  %v88 = vld [vmem:[%s1 + $0xc8] sm:$0xff]
  %v89 = vld [vmem:[%s1 + $0xd0] sm:$0xff]
  %v90 = vld [vmem:[%s1 + $0xd8] sm:$0xff]
  %v91 = vld [vmem:[%s1 + $0xe0] sm:$0xff]
  %v92 = vld [vmem:[%s1 + $0xe8] sm:$0xff]
  %v93 = vld [vmem:[%s1 + $0xf0] sm:$0xff]
  %v94 = vld [vmem:[%s1 + $0xf8] sm:$0xff]
  %v95 = vld [vmem:[%s1 + $0x100] sm:$0xff]
  %v96 = vld [vmem:[%s1 + $0x108] sm:$0xff]
  %v97 = vld [vmem:[%s1 + $0x110] sm:$0xff]
  %v98 = vld [vmem:[%s1 + $0x118] sm:$0xff]
  %v99 = vld [vmem:[%s1 + $0x120] sm:$0xff]
  %v100 = vld [vmem:[%s1 + $0x128] sm:$0xff]
  %v101 = vld [vmem:[%s1 + $0x130] sm:$0xff]
  %v102 = vld [vmem:[%s1 + $0x138] sm:$0xff]
  %v103 = vld [vmem:[%s1 + $0x140] sm:$0xff]
  %v104 = vld [vmem:[%s1 + $0x148] sm:$0xff]
  %v105 = vld [vmem:[%s1 + $0x150] sm:$0xff]
  %v106 = vld [vmem:[%s1 + $0x158] sm:$0xff]
  %v107 = vld [vmem:[%s1 + $0x160] sm:$0xff]
  %v108 = vld [vmem:[%s1 + $0x168] sm:$0xff]
  %v109 = vld [vmem:[%s1 + $0x170] sm:$0xff]
  %v110 = vld [vmem:[%s1 + $0x178] sm:$0xff]
  %v111 = vld [vmem:[%s1 + $0x180] sm:$0xff]
  %v112 = vld [vmem:[%s1 + $0x188] sm:$0xff]
  %v113 = vld [vmem:[%s1 + $0x190] sm:$0xff]
  %v114 = vld [vmem:[%s1 + $0x198] sm:$0xff]
  %v115 = vld [vmem:[%s1 + $0x1a0] sm:$0xff]
  %v116 = vld [vmem:[%s1 + $0x1a8] sm:$0xff]
  %v117 = vld [vmem:[%s1 + $0x1b0] sm:$0xff]
  %v118 = vld [vmem:[%s1 + $0x1b8] sm:$0xff]
  %v119 = vld [vmem:[%s1 + $0x1c0] sm:$0xff]
  %v120 = vld [vmem:[%s1 + $0x1c8] sm:$0xff]
  %v121 = vld [vmem:[%s1 + $0x1d0] sm:$0xff]
  %v122 = vld [vmem:[%s1 + $0x1d8] sm:$0xff]
  %v123 = vld [vmem:[%s1 + $0x1e0] sm:$0xff]
  %v124 = vld [vmem:[%s1 + $0x1e8] sm:$0xff]
  %v125 = vld [vmem:[%s1 + $0x1f0] sm:$0xff]
  %v126 = vld [vmem:[%s1 + $0x1f8] sm:$0xff]
  %v127 = vld [vmem:[%s1 + $0x200] sm:$0xff]
  %v128 = vld [vmem:[%s1 + $0x208] sm:$0xff]
  %v129 = vld [vmem:[%s1 + $0x210] sm:$0xff]
  %v130 = vld [vmem:[%s1 + $0x218] sm:$0xff]
  %v131 = vld [vmem:[%s1 + $0x220] sm:$0xff]
  %v132 = vld [vmem:[%s1 + $0x228] sm:$0xff]
  %v133 = vld [vmem:[%s1 + $0x230] sm:$0xff]
  %v134 = vld [vmem:[%s1 + $0x238] sm:$0xff]
  %v135 = vld [vmem:[%s1 + $0x240] sm:$0xff]
  %v136 = vld [vmem:[%s1 + $0x248] sm:$0xff]
  %v137 = vld [vmem:[%s1 + $0x250] sm:$0xff]
  %v138 = vld [vmem:[%s1 + $0x258] sm:$0xff]
  %v139 = vld [vmem:[%s1 + $0x260] sm:$0xff]
  %v140 = vld [vmem:[%s1 + $0x268] sm:$0xff]
  %v141 = vld [vmem:[%s1 + $0x270] sm:$0xff]
  %v142 = vld [vmem:[%s1 + $0x278] sm:$0xff]
  %v143 = vld [vmem:[%s1 + $0x280] sm:$0xff]
  %v144 = vld [vmem:[%s1 + $0x288] sm:$0xff]
  %v145 = vld [vmem:[%s1 + $0x290] sm:$0xff]
  %v146 = vld [vmem:[%s1 + $0x298] sm:$0xff]
  %v147 = vld [vmem:[%s1 + $0x2a0] sm:$0xff]
  %v148 = vld [vmem:[%s1 + $0x2a8] sm:$0xff]
  %v149 = vld [vmem:[%s1 + $0x2b0] sm:$0xff]
  %v150 = vld [vmem:[%s1 + $0x2b8] sm:$0xff]
  %v151 = vld [vmem:[%s1 + $0x2c0] sm:$0xff]
  %v152 = vld [vmem:[%s1 + $0x2c8] sm:$0xff]
  %v153 = vld [vmem:[%s1 + $0x2d0] sm:$0xff]
  %v154 = vld [vmem:[%s1 + $0x2d8] sm:$0xff]
  %v155 = vld [vmem:[%s1 + $0x2e0] sm:$0xff]
  %v156 = vld [vmem:[%s1 + $0x2e8] sm:$0xff]
  %v157 = vld [vmem:[%s1 + $0x2f0] sm:$0xff]
  %v158 = vld [vmem:[%s1 + $0x2f8] sm:$0xff]
  %v159 = vld [vmem:[%s1 + $0x300] sm:$0xff]
  %v160 = vld [vmem:[%s1 + $0x308] sm:$0xff]
  %v161 = vld [vmem:[%s1 + $0x310] sm:$0xff]
  %v162 = vld [vmem:[%s1 + $0x318] sm:$0xff]
  %v163 = vld [vmem:[%s1 + $0x320] sm:$0xff]
  %v164 = vld [vmem:[%s1 + $0x328] sm:$0xff]
  %v165 = vld [vmem:[%s1 + $0x330] sm:$0xff]
  %v166 = vld [vmem:[%s1 + $0x338] sm:$0xff]
  %v167 = vld [vmem:[%s1 + $0x340] sm:$0xff]
  %v168 = vld [vmem:[%s1 + $0x348] sm:$0xff]
  %v169 = vld [vmem:[%s1 + $0x350] sm:$0xff]
  %v170 = vld [vmem:[%s1 + $0x358] sm:$0xff]
  %v171 = vld [vmem:[%s1 + $0x360] sm:$0xff]
  %v172 = vld [vmem:[%s1 + $0x368] sm:$0xff]
  %v173 = vld [vmem:[%s1 + $0x370] sm:$0xff]
  %v174 = vld [vmem:[%s1 + $0x378] sm:$0xff]
  %v175 = vld [vmem:[%s1 + $0x380] sm:$0xff]
  %v176 = vld [vmem:[%s1 + $0x388] sm:$0xff]
  %v177 = vld [vmem:[%s1 + $0x390] sm:$0xff]
  %v178 = vld [vmem:[%s1 + $0x398] sm:$0xff]
  %v179 = vld [vmem:[%s1 + $0x3a0] sm:$0xff]
  %v180 = vld [vmem:[%s1 + $0x3a8] sm:$0xff]
  %v181 = vld [vmem:[%s1 + $0x3b0] sm:$0xff]
  %v182 = vld [vmem:[%s1 + $0x3b8] sm:$0xff]
  %v183 = vld [vmem:[%s1 + $0x3c0] sm:$0xff]
  %v184 = vld [vmem:[%s1 + $0x3c8] sm:$0xff]
  %v185 = vld [vmem:[%s1 + $0x3d0] sm:$0xff]
  %v186 = vld [vmem:[%s1 + $0x3d8] sm:$0xff]
  %v187 = vld [vmem:[%s1 + $0x3e0] sm:$0xff]
  %v188 = vld [vmem:[%s1 + $0x3e8] sm:$0xff]
  %v189 = vld [vmem:[%s1 + $0x3f0] sm:$0xff]
  %v190 = vld [vmem:[%s1 + $0x3f8] sm:$0xff]
  %v191 = vld [vmem:[%s1 + $0x400] sm:$0xff]
  %v192 = vld [vmem:[%s1 + $0x408] sm:$0xff]
  %v193 = vld [vmem:[%s1 + $0x410] sm:$0xff]
  %v194 = vld [vmem:[%s1 + $0x418] sm:$0xff]
  %v195 = vld [vmem:[%s1 + $0x420] sm:$0xff]
  %v196 = vld [vmem:[%s1 + $0x428] sm:$0xff]
  %v197 = vld [vmem:[%s1 + $0x430] sm:$0xff]
  %v198 = vld [vmem:[%s1 + $0x438] sm:$0xff]
  %v199 = vld [vmem:[%s1 + $0x440] sm:$0xff]
  %v200 = vld [vmem:[%s1 + $0x448] sm:$0xff]
  %v201 = vld [vmem:[%s1 + $0x450] sm:$0xff]
  %v202 = vld [vmem:[%s1 + $0x458] sm:$0xff]
  %v203 = vld [vmem:[%s1 + $0x460] sm:$0xff]
  %v204 = vld [vmem:[%s1 + $0x468] sm:$0xff]
  %v205 = vld [vmem:[%s1 + $0x470] sm:$0xff]
  %v206 = vld [vmem:[%s1 + $0x478] sm:$0xff]
  %v207 = vld [vmem:[%s1 + $0x480] sm:$0xff]
  %v208 = vld [vmem:[%s1 + $0x488] sm:$0xff]
  %v209 = vld [vmem:[%s1 + $0x490] sm:$0xff]
  %v210 = vld [vmem:[%s1 + $0x498] sm:$0xff]
  %v211 = vld [vmem:[%s1 + $0x4a0] sm:$0xff]
  %v212 = vld [vmem:[%s1 + $0x4a8] sm:$0xff]
  %v213 = vld [vmem:[%s1 + $0x4b0] sm:$0xff]
  %v214 = vld [vmem:[%s1 + $0x4b8] sm:$0xff]
  %v215 = vld [vmem:[%s1 + $0x4c0] sm:$0xff]
  %v216 = vld [vmem:[%s1 + $0x4c8] sm:$0xff]
  %v217 = vld [vmem:[%s1 + $0x4d0] sm:$0xff]
  %v218 = vld [vmem:[%s1 + $0x4d8] sm:$0xff]
  %v219 = vld [vmem:[%s1 + $0x4e0] sm:$0xff]
  %v220 = vld [vmem:[%s1 + $0x4e8] sm:$0xff]
  %v221 = vld [vmem:[%s1 + $0x4f0] sm:$0xff]
  %v222 = vld [vmem:[%s1 + $0x4f8] sm:$0xff]
  %v223 = vld [vmem:[%s1 + $0x500] sm:$0xff]
  %v224 = vld [vmem:[%s1 + $0x508] sm:$0xff]
  %v225 = vld [vmem:[%s1 + $0x510] sm:$0xff]
  %v226 = vld [vmem:[%s1 + $0x518] sm:$0xff]
  %v227 = vld [vmem:[%s1 + $0x520] sm:$0xff]
  %v228 = vld [vmem:[%s1 + $0x528] sm:$0xff]
  %v229 = vld [vmem:[%s1 + $0x530] sm:$0xff]
  %v230 = vld [vmem:[%s1 + $0x538] sm:$0xff]
  %v231 = vld [vmem:[%s1 + $0x540] sm:$0xff]
  %v232 = vld [vmem:[%s1 + $0x548] sm:$0xff]
  %v233 = vld [vmem:[%s1 + $0x550] sm:$0xff]
  %v234 = vld [vmem:[%s1 + $0x558] sm:$0xff]
  %v235 = vld [vmem:[%s1 + $0x560] sm:$0xff]
  %v236 = vld [vmem:[%s1 + $0x568] sm:$0xff]
  %v237 = vld [vmem:[%s1 + $0x570] sm:$0xff]
  %v238 = vld [vmem:[%s1 + $0x578] sm:$0xff]
  %v239 = vld [vmem:[%s1 + $0x580] sm:$0xff]
  %v240 = vld [vmem:[%s1 + $0x588] sm:$0xff]
  %v241 = vld [vmem:[%s1 + $0x590] sm:$0xff]
  %v242 = vld [vmem:[%s1 + $0x598] sm:$0xff]
  %v243 = vld [vmem:[%s1 + $0x5a0] sm:$0xff]
  %v244 = vld [vmem:[%s1 + $0x5a8] sm:$0xff]
  %v245 = vld [vmem:[%s1 + $0x5b0] sm:$0xff]
  %v246 = vld [vmem:[%s1 + $0x5b8] sm:$0xff]
  %v247 = vld [vmem:[%s1 + $0x5c0] sm:$0xff]
  %v248 = vld [vmem:[%s1 + $0x5c8] sm:$0xff]
  %v249 = vld [vmem:[%s1 + $0x5d0] sm:$0xff]
  %v250 = vld [vmem:[%s1 + $0x5d8] sm:$0xff]
  %v251 = vld [vmem:[%s1 + $0x5e0] sm:$0xff]
  %v252 = vld [vmem:[%s1 + $0x5e8] sm:$0xff]
  %v253 = vld [vmem:[%s1 + $0x5f0] sm:$0xff]
  %v254 = vld [vmem:[%s1 + $0x5f8] sm:$0xff]
  %v255 = vld [vmem:[%s1 + $0x600] sm:$0xff]
  %v256 = vld [vmem:[%s1 + $0x608] sm:$0xff]
  %v257 = vld [vmem:[%s1 + $0x610] sm:$0xff]
  %v258 = vld [vmem:[%s1 + $0x618] sm:$0xff]
  %v259 = vld [vmem:[%s1 + $0x620] sm:$0xff]
  %v260 = vld [vmem:[%s1 + $0x628] sm:$0xff]
  %v261 = vld [vmem:[%s1 + $0x630] sm:$0xff]
  %v262 = vld [vmem:[%s1 + $0x638] sm:$0xff]
  %v263 = vld [vmem:[%s1 + $0x640] sm:$0xff]
  %v264 = vld [vmem:[%s1 + $0x648] sm:$0xff]
  %v265 = vld [vmem:[%s1 + $0x650] sm:$0xff]
  %v266 = vld [vmem:[%s1 + $0x658] sm:$0xff]
  %v267 = vld [vmem:[%s1 + $0x660] sm:$0xff]
  %v268 = vld [vmem:[%s1 + $0x668] sm:$0xff]
  %v269 = vld [vmem:[%s1 + $0x670] sm:$0xff]
  %v270 = vld [vmem:[%s1 + $0x678] sm:$0xff]
  %v271 = vld [vmem:[%s1 + $0x680] sm:$0xff]
  %v272 = vld [vmem:[%s1 + $0x688] sm:$0xff]
  %v273 = vld [vmem:[%s1 + $0x690] sm:$0xff]
  %v274 = vld [vmem:[%s1 + $0x698] sm:$0xff]
  %v275 = vld [vmem:[%s1 + $0x6a0] sm:$0xff]
  %v276 = vld [vmem:[%s1 + $0x6a8] sm:$0xff]
  %v277 = vld [vmem:[%s1 + $0x6b0] sm:$0xff]
  %v278 = vld [vmem:[%s1 + $0x6b8] sm:$0xff]
  %v279 = vld [vmem:[%s1 + $0x6c0] sm:$0xff]
  %v280 = vld [vmem:[%s1 + $0x6c8] sm:$0xff]
  %v281 = vld [vmem:[%s1 + $0x6d0] sm:$0xff]
  %v282 = vld [vmem:[%s1 + $0x6d8] sm:$0xff]
  %v283 = vld [vmem:[%s1 + $0x6e0] sm:$0xff]
  %v284 = vld [vmem:[%s1 + $0x6e8] sm:$0xff]
  %v285 = vld [vmem:[%s1 + $0x6f0] sm:$0xff]
  %v286 = vld [vmem:[%s1 + $0x6f8] sm:$0xff]
  %v287 = vld [vmem:[%s1 + $0x700] sm:$0xff]
  %v288 = vld [vmem:[%s1 + $0x708] sm:$0xff]
  %v289 = vld [vmem:[%s1 + $0x710] sm:$0xff]
  %v290 = vld [vmem:[%s1 + $0x718] sm:$0xff]
  %v291 = vld [vmem:[%s1 + $0x720] sm:$0xff]
  %v292 = vld [vmem:[%s1 + $0x728] sm:$0xff]
  %v293 = vld [vmem:[%s1 + $0x730] sm:$0xff]
  %v294 = vld [vmem:[%s1 + $0x738] sm:$0xff]
  %v295 = vld [vmem:[%s1 + $0x740] sm:$0xff]
  %v296 = vld [vmem:[%s1 + $0x748] sm:$0xff]
  %v297 = vld [vmem:[%s1 + $0x750] sm:$0xff]
  %v298 = vld [vmem:[%s1 + $0x758] sm:$0xff]
  %v299 = vld [vmem:[%s1 + $0x760] sm:$0xff]
  %v300 = vld [vmem:[%s1 + $0x768] sm:$0xff]
  %v301 = vld [vmem:[%s1 + $0x770] sm:$0xff]
  %v302 = vld [vmem:[%s1 + $0x778] sm:$0xff]
  %v303 = vld [vmem:[%s1 + $0x780] sm:$0xff]
  %v304 = vld [vmem:[%s1 + $0x788] sm:$0xff]
  %v305 = vld [vmem:[%s1 + $0x790] sm:$0xff]
  %v306 = vld [vmem:[%s1 + $0x798] sm:$0xff]
  %v307 = vld [vmem:[%s1 + $0x7a0] sm:$0xff]
  %v308 = vld [vmem:[%s1 + $0x7a8] sm:$0xff]
  %v309 = vld [vmem:[%s1 + $0x7b0] sm:$0xff]
  %v310 = vld [vmem:[%s1 + $0x7b8] sm:$0xff]
  %v311 = vld [vmem:[%s1 + $0x7c0] sm:$0xff]
  %v312 = vld [vmem:[%s1 + $0x7c8] sm:$0xff]
  %v313 = vld [vmem:[%s1 + $0x7d0] sm:$0xff]
  %v314 = vld [vmem:[%s1 + $0x7d8] sm:$0xff]
  %v315 = vld [vmem:[%s1 + $0x7e0] sm:$0xff]
  %v316 = vld [vmem:[%s1 + $0x7e8] sm:$0xff]
  %v317 = vld [vmem:[%s1 + $0x7f0] sm:$0xff]
  %v318 = vld [vmem:[%s1 + $0x7f8] sm:$0xff]
  %v319 = vld [vmem:[%s1 + $0x800] sm:$0xff]
  %v320 = vld [vmem:[%s1 + $0x808] sm:$0xff]
  %v321 = vld [vmem:[%s1 + $0x810] sm:$0xff]
  %v322 = vld [vmem:[%s1 + $0x818] sm:$0xff]
  %v323 = vld [vmem:[%s1 + $0x820] sm:$0xff]
  %v324 = vld [vmem:[%s1 + $0x828] sm:$0xff]
  %v325 = vld [vmem:[%s1 + $0x830] sm:$0xff]
  %v326 = vld [vmem:[%s1 + $0x838] sm:$0xff]
  %v327 = vld [vmem:[%s1 + $0x840] sm:$0xff]
  %v328 = vld [vmem:[%s1 + $0x848] sm:$0xff]
  %v329 = vld [vmem:[%s1 + $0x850] sm:$0xff]
  %v330 = vld [vmem:[%s1 + $0x858] sm:$0xff]
  %v331 = vld [vmem:[%s1 + $0x860] sm:$0xff]
  %v332 = vld [vmem:[%s1 + $0x868] sm:$0xff]
  %v333 = vld [vmem:[%s1 + $0x870] sm:$0xff]
  %v334 = vld [vmem:[%s1 + $0x878] sm:$0xff]
  %v335 = vld [vmem:[%s1 + $0x880] sm:$0xff]
  %v336 = vld [vmem:[%s1 + $0x888] sm:$0xff]
  %v337 = vld [vmem:[%s1 + $0x890] sm:$0xff]
  %v338 = vld [vmem:[%s1 + $0x898] sm:$0xff]
  %v339 = vld [vmem:[%s1 + $0x8a0] sm:$0xff]
  %v340 = vld [vmem:[%s1 + $0x8a8] sm:$0xff]
  %v341 = vld [vmem:[%s1 + $0x8b0] sm:$0xff]
  %v342 = vld [vmem:[%s1 + $0x8b8] sm:$0xff]
  %v343 = vld [vmem:[%s1 + $0x8c0] sm:$0xff]
  %v344 = vld [vmem:[%s1 + $0x8c8] sm:$0xff]
  %v345 = vld [vmem:[%s1 + $0x8d0] sm:$0xff]
  %v346 = vld [vmem:[%s1 + $0x8d8] sm:$0xff]
  %v347 = vld [vmem:[%s1 + $0x8e0] sm:$0xff]
  %v348 = vld [vmem:[%s1 + $0x8e8] sm:$0xff]
  %v349 = vld [vmem:[%s1 + $0x8f0] sm:$0xff]
  %v350 = vld [vmem:[%s1 + $0x8f8] sm:$0xff]
  %v351 = vld [vmem:[%s1 + $0x900] sm:$0xff]
  %v352 = vld [vmem:[%s1 + $0x908] sm:$0xff]
  %v353 = vld [vmem:[%s1 + $0x910] sm:$0xff]
  %v354 = vld [vmem:[%s1 + $0x918] sm:$0xff]
  %v355 = vld [vmem:[%s1 + $0x920] sm:$0xff]
  %v356 = vld [vmem:[%s1 + $0x928] sm:$0xff]
  %v357 = vld [vmem:[%s1 + $0x930] sm:$0xff]
  %v358 = vld [vmem:[%s1 + $0x938] sm:$0xff]
  %v359 = vld [vmem:[%s1 + $0x940] sm:$0xff]
  %v360 = vld [vmem:[%s1 + $0x948] sm:$0xff]
  %v361 = vld [vmem:[%s1 + $0x950] sm:$0xff]
  %v362 = vld [vmem:[%s1 + $0x958] sm:$0xff]
  %v363 = vld [vmem:[%s1 + $0x960] sm:$0xff]
  %v364 = vld [vmem:[%s1 + $0x968] sm:$0xff]
  %v365 = vld [vmem:[%s1 + $0x970] sm:$0xff]
  %v366 = vld [vmem:[%s1 + $0x978] sm:$0xff]
  %v367 = vld [vmem:[%s1 + $0x980] sm:$0xff]
  %v368 = vld [vmem:[%s1 + $0x988] sm:$0xff]
  %v369 = vld [vmem:[%s1 + $0x990] sm:$0xff]
  %v370 = vld [vmem:[%s1 + $0x998] sm:$0xff]
  %v371 = vld [vmem:[%s1 + $0x9a0] sm:$0xff]
  %v372 = vld [vmem:[%s1 + $0x9a8] sm:$0xff]
  %v373 = vld [vmem:[%s1 + $0x9b0] sm:$0xff]
  %v374 = vld [vmem:[%s1 + $0x9b8] sm:$0xff]
  %v375 = vld [vmem:[%s1 + $0x9c0] sm:$0xff]
  %v376 = vld [vmem:[%s1 + $0x9c8] sm:$0xff]
  %v377 = vld [vmem:[%s1 + $0x9d0] sm:$0xff]
  %v378 = vld [vmem:[%s1 + $0x9d8] sm:$0xff]
  %v379 = vld [vmem:[%s1 + $0x9e0] sm:$0xff]
  %v380 = vld [vmem:[%s1 + $0x9e8] sm:$0xff]
  %v381 = vld [vmem:[%s1 + $0x9f0] sm:$0xff]
  %v382 = vld [vmem:[%s1 + $0x9f8] sm:$0xff]
  %v383 = vld [vmem:[%s1 + $0xa00] sm:$0xff]
  %v384 = vld [vmem:[%s1 + $0xa08] sm:$0xff]
  %v385 = vld [vmem:[%s1 + $0xa10] sm:$0xff]
  %v386 = vld [vmem:[%s1 + $0xa18] sm:$0xff]
  %v387 = vld [vmem:[%s1 + $0xa20] sm:$0xff]
  %v388 = vld [vmem:[%s1 + $0xa28] sm:$0xff]
  %v389 = vld [vmem:[%s1 + $0xa30] sm:$0xff]
  %v390 = vld [vmem:[%s1 + $0xa38] sm:$0xff]
  %v391 = vld [vmem:[%s1 + $0xa40] sm:$0xff]
  %v392 = vld [vmem:[%s1 + $0xa48] sm:$0xff]
  %v393 = vld [vmem:[%s1 + $0xa50] sm:$0xff]
  %v394 = vld [vmem:[%s1 + $0xa58] sm:$0xff]
  %v395 = vld [vmem:[%s1 + $0xa60] sm:$0xff]
  %v396 = vld [vmem:[%s1 + $0xa68] sm:$0xff]
  %v397 = vld [vmem:[%s1 + $0xa70] sm:$0xff]
  %v398 = vld [vmem:[%s1 + $0xa78] sm:$0xff]
  %v399 = vld [vmem:[%s1 + $0xa80] sm:$0xff]
  %v400 = vld [vmem:[%s1 + $0xa88] sm:$0xff]
  %v401 = vld [vmem:[%s1 + $0xa90] sm:$0xff]
  %v402 = vld [vmem:[%s1 + $0xa98] sm:$0xff]
  %v403 = vld [vmem:[%s1 + $0xaa0] sm:$0xff]
  %v404 = vld [vmem:[%s1 + $0xaa8] sm:$0xff]
  %v405 = vld [vmem:[%s1 + $0xab0] sm:$0xff]
  %v406 = vld [vmem:[%s1 + $0xab8] sm:$0xff]
  %v407 = vld [vmem:[%s1 + $0xac0] sm:$0xff]
  %v408 = vld [vmem:[%s1 + $0xac8] sm:$0xff]
  %v409 = vld [vmem:[%s1 + $0xad0] sm:$0xff]
  %v410 = vld [vmem:[%s1 + $0xad8] sm:$0xff]
  %v411 = vld [vmem:[%s1 + $0xae0] sm:$0xff]
  %v412 = vld [vmem:[%s1 + $0xae8] sm:$0xff]
  %v413 = vld [vmem:[%s1 + $0xaf0] sm:$0xff]
  %v414 = vld [vmem:[%s1 + $0xaf8] sm:$0xff]
  %v415 = vld [vmem:[%s1 + $0xb00] sm:$0xff]
  %v416 = vld [vmem:[%s1 + $0xb08] sm:$0xff]
  %v417 = vld [vmem:[%s1 + $0xb10] sm:$0xff]
  %v418 = vld [vmem:[%s1 + $0xb18] sm:$0xff]
  %v419 = vld [vmem:[%s1 + $0xb20] sm:$0xff]
  %v420 = vld [vmem:[%s1 + $0xb28] sm:$0xff]
  %v421 = vld [vmem:[%s1 + $0xb30] sm:$0xff]
  %v422 = vld [vmem:[%s1 + $0xb38] sm:$0xff]
  %v423 = vld [vmem:[%s1 + $0xb40] sm:$0xff]
  %v424 = vld [vmem:[%s1 + $0xb48] sm:$0xff]
  %v425 = vld [vmem:[%s1 + $0xb50] sm:$0xff]
  %v426 = vld [vmem:[%s1 + $0xb58] sm:$0xff]
  %v427 = vld [vmem:[%s1 + $0xb60] sm:$0xff]
  %v428 = vld [vmem:[%s1 + $0xb68] sm:$0xff]
  %v429 = vld [vmem:[%s1 + $0xb70] sm:$0xff]
  %v430 = vld [vmem:[%s1 + $0xb78] sm:$0xff]
  %v431 = vld [vmem:[%s1 + $0xb80] sm:$0xff]
  %v432 = vld [vmem:[%s1 + $0xb88] sm:$0xff]
  %v433 = vld [vmem:[%s1 + $0xb90] sm:$0xff]
  %v434 = vld [vmem:[%s1 + $0xb98] sm:$0xff]
  %v435 = vld [vmem:[%s1 + $0xba0] sm:$0xff]
  %v436 = vld [vmem:[%s1 + $0xba8] sm:$0xff]
  %v437 = vld [vmem:[%s1 + $0xbb0] sm:$0xff]
  %v438 = vld [vmem:[%s1 + $0xbb8] sm:$0xff]
  %v439 = vld [vmem:[%s1 + $0xbc0] sm:$0xff]
  %v440 = vld [vmem:[%s1 + $0xbc8] sm:$0xff]
  %v441 = vld [vmem:[%s1 + $0xbd0] sm:$0xff]
  %v442 = vld [vmem:[%s1 + $0xbd8] sm:$0xff]
  %v443 = vld [vmem:[%s1 + $0xbe0] sm:$0xff]
  %v444 = vld [vmem:[%s1 + $0xbe8] sm:$0xff]
  %v445 = vld [vmem:[%s1 + $0xbf0] sm:$0xff]
  %v446 = vld [vmem:[%s1 + $0xbf8] sm:$0xff]
  %v453 = vunpack.c.l.b16 %v57
  %v454 = vunpack.c.h.b16 %v57
  %v455 = vunpack.c.l.b16 %v58
  %v456 = vunpack.c.h.b16 %v58
  %v457 = vunpack.c.l.b16 %v59
  %v458 = vunpack.c.h.b16 %v59
  %v459 = vunpack.c.l.b16 %v60
  %v460 = vunpack.c.h.b16 %v60
  %v461 = vunpack.c.l.b16 %v61
  %v462 = vunpack.c.h.b16 %v61
  %v463 = vunpack.c.l.b16 %v62
  %v464 = vunpack.c.h.b16 %v62
  %v465 = vpack.c.b16 %v459, %v453
  %v466 = vpack.c.b16 %v460, %v454
  %v467 = vpack.c.b16 %v461, %v455
  %v468 = vpack.c.b16 %v462, %v456
  %v469 = vpack.c.b16 %v463, %v457
  %v470 = vpack.c.b16 %v464, %v458
  %v861 = vunpack.c.l.b16 %v63
  %v862 = vunpack.c.h.b16 %v63
  %v863 = vunpack.c.l.b16 %v64
  %v864 = vunpack.c.h.b16 %v64
  %v865 = vunpack.c.l.b16 %v65
  %v866 = vunpack.c.h.b16 %v65
  %v867 = vunpack.c.l.b16 %v66
  %v868 = vunpack.c.h.b16 %v66
  %v869 = vunpack.c.l.b16 %v67
  %v870 = vunpack.c.h.b16 %v67
  %v871 = vunpack.c.l.b16 %v68
  %v872 = vunpack.c.h.b16 %v68
  %v873 = vunpack.c.l.b16 %v69
  %v874 = vunpack.c.h.b16 %v69
  %v875 = vunpack.c.l.b16 %v70
  %v876 = vunpack.c.h.b16 %v70
  %v877 = vunpack.c.l.b16 %v71
  %v878 = vunpack.c.h.b16 %v71
  %v879 = vunpack.c.l.b16 %v72
  %v880 = vunpack.c.h.b16 %v72
  %v881 = vunpack.c.l.b16 %v73
  %v882 = vunpack.c.h.b16 %v73
  %v883 = vunpack.c.l.b16 %v74
  %v884 = vunpack.c.h.b16 %v74
  %v885 = vunpack.c.l.b16 %v75
  %v886 = vunpack.c.h.b16 %v75
  %v887 = vunpack.c.l.b16 %v76
  %v888 = vunpack.c.h.b16 %v76
  %v889 = vunpack.c.l.b16 %v77
  %v890 = vunpack.c.h.b16 %v77
  %v891 = vunpack.c.l.b16 %v78
  %v892 = vunpack.c.h.b16 %v78
  %v893 = vunpack.c.l.b16 %v79
  %v894 = vunpack.c.h.b16 %v79
  %v895 = vunpack.c.l.b16 %v80
  %v896 = vunpack.c.h.b16 %v80
  %v897 = vunpack.c.l.b16 %v81
  %v898 = vunpack.c.h.b16 %v81
  %v899 = vunpack.c.l.b16 %v82
  %v900 = vunpack.c.h.b16 %v82
  %v901 = vunpack.c.l.b16 %v83
  %v902 = vunpack.c.h.b16 %v83
  %v903 = vunpack.c.l.b16 %v84
  %v904 = vunpack.c.h.b16 %v84
  %v905 = vunpack.c.l.b16 %v85
  %v906 = vunpack.c.h.b16 %v85
  %v907 = vunpack.c.l.b16 %v86
  %v908 = vunpack.c.h.b16 %v86
  %v909 = vunpack.c.l.b16 %v87
  %v910 = vunpack.c.h.b16 %v87
  %v911 = vunpack.c.l.b16 %v88
  %v912 = vunpack.c.h.b16 %v88
  %v913 = vunpack.c.l.b16 %v89
  %v914 = vunpack.c.h.b16 %v89
  %v915 = vunpack.c.l.b16 %v90
  %v916 = vunpack.c.h.b16 %v90
  %v917 = vunpack.c.l.b16 %v91
  %v918 = vunpack.c.h.b16 %v91
  %v919 = vunpack.c.l.b16 %v92
  %v920 = vunpack.c.h.b16 %v92
  %v921 = vunpack.c.l.b16 %v93
  %v922 = vunpack.c.h.b16 %v93
  %v923 = vunpack.c.l.b16 %v94
  %v924 = vunpack.c.h.b16 %v94
  %v925 = vunpack.c.l.b16 %v95
  %v926 = vunpack.c.h.b16 %v95
  %v927 = vunpack.c.l.b16 %v96
  %v928 = vunpack.c.h.b16 %v96
  %v929 = vunpack.c.l.b16 %v97
  %v930 = vunpack.c.h.b16 %v97
  %v931 = vunpack.c.l.b16 %v98
  %v932 = vunpack.c.h.b16 %v98
  %v933 = vunpack.c.l.b16 %v99
  %v934 = vunpack.c.h.b16 %v99
  %v935 = vunpack.c.l.b16 %v100
  %v936 = vunpack.c.h.b16 %v100
  %v937 = vunpack.c.l.b16 %v101
  %v938 = vunpack.c.h.b16 %v101
  %v939 = vunpack.c.l.b16 %v102
  %v940 = vunpack.c.h.b16 %v102
  %v941 = vunpack.c.l.b16 %v103
  %v942 = vunpack.c.h.b16 %v103
  %v943 = vunpack.c.l.b16 %v104
  %v944 = vunpack.c.h.b16 %v104
  %v945 = vunpack.c.l.b16 %v105
  %v946 = vunpack.c.h.b16 %v105
  %v947 = vunpack.c.l.b16 %v106
  %v948 = vunpack.c.h.b16 %v106
  %v949 = vunpack.c.l.b16 %v107
  %v950 = vunpack.c.h.b16 %v107
  %v951 = vunpack.c.l.b16 %v108
  %v952 = vunpack.c.h.b16 %v108
  %v953 = vunpack.c.l.b16 %v109
  %v954 = vunpack.c.h.b16 %v109
  %v955 = vunpack.c.l.b16 %v110
  %v956 = vunpack.c.h.b16 %v110
  %v957 = vunpack.c.l.b16 %v111
  %v958 = vunpack.c.h.b16 %v111
  %v959 = vunpack.c.l.b16 %v112
  %v960 = vunpack.c.h.b16 %v112
  %v961 = vunpack.c.l.b16 %v113
  %v962 = vunpack.c.h.b16 %v113
  %v963 = vunpack.c.l.b16 %v114
  %v964 = vunpack.c.h.b16 %v114
  %v965 = vunpack.c.l.b16 %v115
  %v966 = vunpack.c.h.b16 %v115
  %v967 = vunpack.c.l.b16 %v116
  %v968 = vunpack.c.h.b16 %v116
  %v969 = vunpack.c.l.b16 %v117
  %v970 = vunpack.c.h.b16 %v117
  %v971 = vunpack.c.l.b16 %v118
  %v972 = vunpack.c.h.b16 %v118
  %v973 = vunpack.c.l.b16 %v119
  %v974 = vunpack.c.h.b16 %v119
  %v975 = vunpack.c.l.b16 %v120
  %v976 = vunpack.c.h.b16 %v120
  %v977 = vunpack.c.l.b16 %v121
  %v978 = vunpack.c.h.b16 %v121
  %v979 = vunpack.c.l.b16 %v122
  %v980 = vunpack.c.h.b16 %v122
  %v981 = vunpack.c.l.b16 %v123
  %v982 = vunpack.c.h.b16 %v123
  %v983 = vunpack.c.l.b16 %v124
  %v984 = vunpack.c.h.b16 %v124
  %v985 = vunpack.c.l.b16 %v125
  %v986 = vunpack.c.h.b16 %v125
  %v987 = vunpack.c.l.b16 %v126
  %v988 = vunpack.c.h.b16 %v126
  %v989 = vunpack.c.l.b16 %v127
  %v990 = vunpack.c.h.b16 %v127
  %v991 = vunpack.c.l.b16 %v128
  %v992 = vunpack.c.h.b16 %v128
  %v993 = vunpack.c.l.b16 %v129
  %v994 = vunpack.c.h.b16 %v129
  %v995 = vunpack.c.l.b16 %v130
  %v996 = vunpack.c.h.b16 %v130
  %v997 = vunpack.c.l.b16 %v131
  %v998 = vunpack.c.h.b16 %v131
  %v999 = vunpack.c.l.b16 %v132
  %v1000 = vunpack.c.h.b16 %v132
  %v1001 = vunpack.c.l.b16 %v133
  %v1002 = vunpack.c.h.b16 %v133
  %v1003 = vunpack.c.l.b16 %v134
  %v1004 = vunpack.c.h.b16 %v134
  %v1005 = vunpack.c.l.b16 %v135
  %v1006 = vunpack.c.h.b16 %v135
  %v1007 = vunpack.c.l.b16 %v136
  %v1008 = vunpack.c.h.b16 %v136
  %v1009 = vunpack.c.l.b16 %v137
  %v1010 = vunpack.c.h.b16 %v137
  %v1011 = vunpack.c.l.b16 %v138
  %v1012 = vunpack.c.h.b16 %v138
  %v1013 = vunpack.c.l.b16 %v139
  %v1014 = vunpack.c.h.b16 %v139
  %v1015 = vunpack.c.l.b16 %v140
  %v1016 = vunpack.c.h.b16 %v140
  %v1017 = vunpack.c.l.b16 %v141
  %v1018 = vunpack.c.h.b16 %v141
  %v1019 = vunpack.c.l.b16 %v142
  %v1020 = vunpack.c.h.b16 %v142
  %v1021 = vunpack.c.l.b16 %v143
  %v1022 = vunpack.c.h.b16 %v143
  %v1023 = vunpack.c.l.b16 %v144
  %v1024 = vunpack.c.h.b16 %v144
  %v1025 = vunpack.c.l.b16 %v145
  %v1026 = vunpack.c.h.b16 %v145
  %v1027 = vunpack.c.l.b16 %v146
  %v1028 = vunpack.c.h.b16 %v146
  %v1029 = vunpack.c.l.b16 %v147
  %v1030 = vunpack.c.h.b16 %v147
  %v1031 = vunpack.c.l.b16 %v148
  %v1032 = vunpack.c.h.b16 %v148
  %v1033 = vunpack.c.l.b16 %v149
  %v1034 = vunpack.c.h.b16 %v149
  %v1035 = vunpack.c.l.b16 %v150
  %v1036 = vunpack.c.h.b16 %v150
  %v1037 = vunpack.c.l.b16 %v151
  %v1038 = vunpack.c.h.b16 %v151
  %v1039 = vunpack.c.l.b16 %v152
  %v1040 = vunpack.c.h.b16 %v152
  %v1041 = vunpack.c.l.b16 %v153
  %v1042 = vunpack.c.h.b16 %v153
  %v1043 = vunpack.c.l.b16 %v154
  %v1044 = vunpack.c.h.b16 %v154
  %v1045 = vunpack.c.l.b16 %v155
  %v1046 = vunpack.c.h.b16 %v155
  %v1047 = vunpack.c.l.b16 %v156
  %v1048 = vunpack.c.h.b16 %v156
  %v1049 = vunpack.c.l.b16 %v157
  %v1050 = vunpack.c.h.b16 %v157
  %v1051 = vunpack.c.l.b16 %v158
  %v1052 = vunpack.c.h.b16 %v158
  %v1053 = vunpack.c.l.b16 %v159
  %v1054 = vunpack.c.h.b16 %v159
  %v1055 = vunpack.c.l.b16 %v160
  %v1056 = vunpack.c.h.b16 %v160
  %v1057 = vunpack.c.l.b16 %v161
  %v1058 = vunpack.c.h.b16 %v161
  %v1059 = vunpack.c.l.b16 %v162
  %v1060 = vunpack.c.h.b16 %v162
  %v1061 = vunpack.c.l.b16 %v163
  %v1062 = vunpack.c.h.b16 %v163
  %v1063 = vunpack.c.l.b16 %v164
  %v1064 = vunpack.c.h.b16 %v164
  %v1065 = vunpack.c.l.b16 %v165
  %v1066 = vunpack.c.h.b16 %v165
  %v1067 = vunpack.c.l.b16 %v166
  %v1068 = vunpack.c.h.b16 %v166
  %v1069 = vunpack.c.l.b16 %v167
  %v1070 = vunpack.c.h.b16 %v167
  %v1071 = vunpack.c.l.b16 %v168
  %v1072 = vunpack.c.h.b16 %v168
  %v1073 = vunpack.c.l.b16 %v169
  %v1074 = vunpack.c.h.b16 %v169
  %v1075 = vunpack.c.l.b16 %v170
  %v1076 = vunpack.c.h.b16 %v170
  %v1077 = vunpack.c.l.b16 %v171
  %v1078 = vunpack.c.h.b16 %v171
  %v1079 = vunpack.c.l.b16 %v172
  %v1080 = vunpack.c.h.b16 %v172
  %v1081 = vunpack.c.l.b16 %v173
  %v1082 = vunpack.c.h.b16 %v173
  %v1083 = vunpack.c.l.b16 %v174
  %v1084 = vunpack.c.h.b16 %v174
  %v1085 = vunpack.c.l.b16 %v175
  %v1086 = vunpack.c.h.b16 %v175
  %v1087 = vunpack.c.l.b16 %v176
  %v1088 = vunpack.c.h.b16 %v176
  %v1089 = vunpack.c.l.b16 %v177
  %v1090 = vunpack.c.h.b16 %v177
  %v1091 = vunpack.c.l.b16 %v178
  %v1092 = vunpack.c.h.b16 %v178
  %v1093 = vunpack.c.l.b16 %v179
  %v1094 = vunpack.c.h.b16 %v179
  %v1095 = vunpack.c.l.b16 %v180
  %v1096 = vunpack.c.h.b16 %v180
  %v1097 = vunpack.c.l.b16 %v181
  %v1098 = vunpack.c.h.b16 %v181
  %v1099 = vunpack.c.l.b16 %v182
  %v1100 = vunpack.c.h.b16 %v182
  %v1101 = vunpack.c.l.b16 %v183
  %v1102 = vunpack.c.h.b16 %v183
  %v1103 = vunpack.c.l.b16 %v184
  %v1104 = vunpack.c.h.b16 %v184
  %v1105 = vunpack.c.l.b16 %v185
  %v1106 = vunpack.c.h.b16 %v185
  %v1107 = vunpack.c.l.b16 %v186
  %v1108 = vunpack.c.h.b16 %v186
  %v1109 = vunpack.c.l.b16 %v187
  %v1110 = vunpack.c.h.b16 %v187
  %v1111 = vunpack.c.l.b16 %v188
  %v1112 = vunpack.c.h.b16 %v188
  %v1113 = vunpack.c.l.b16 %v189
  %v1114 = vunpack.c.h.b16 %v189
  %v1115 = vunpack.c.l.b16 %v190
  %v1116 = vunpack.c.h.b16 %v190
  %v1117 = vunpack.c.l.b16 %v191
  %v1118 = vunpack.c.h.b16 %v191
  %v1119 = vunpack.c.l.b16 %v192
  %v1120 = vunpack.c.h.b16 %v192
  %v1121 = vunpack.c.l.b16 %v193
  %v1122 = vunpack.c.h.b16 %v193
  %v1123 = vunpack.c.l.b16 %v194
  %v1124 = vunpack.c.h.b16 %v194
  %v1125 = vunpack.c.l.b16 %v195
  %v1126 = vunpack.c.h.b16 %v195
  %v1127 = vunpack.c.l.b16 %v196
  %v1128 = vunpack.c.h.b16 %v196
  %v1129 = vunpack.c.l.b16 %v197
  %v1130 = vunpack.c.h.b16 %v197
  %v1131 = vunpack.c.l.b16 %v198
  %v1132 = vunpack.c.h.b16 %v198
  %v1133 = vunpack.c.l.b16 %v199
  %v1134 = vunpack.c.h.b16 %v199
  %v1135 = vunpack.c.l.b16 %v200
  %v1136 = vunpack.c.h.b16 %v200
  %v1137 = vunpack.c.l.b16 %v201
  %v1138 = vunpack.c.h.b16 %v201
  %v1139 = vunpack.c.l.b16 %v202
  %v1140 = vunpack.c.h.b16 %v202
  %v1141 = vunpack.c.l.b16 %v203
  %v1142 = vunpack.c.h.b16 %v203
  %v1143 = vunpack.c.l.b16 %v204
  %v1144 = vunpack.c.h.b16 %v204
  %v1145 = vunpack.c.l.b16 %v205
  %v1146 = vunpack.c.h.b16 %v205
  %v1147 = vunpack.c.l.b16 %v206
  %v1148 = vunpack.c.h.b16 %v206
  %v1149 = vunpack.c.l.b16 %v207
  %v1150 = vunpack.c.h.b16 %v207
  %v1151 = vunpack.c.l.b16 %v208
  %v1152 = vunpack.c.h.b16 %v208
  %v1153 = vunpack.c.l.b16 %v209
  %v1154 = vunpack.c.h.b16 %v209
  %v1155 = vunpack.c.l.b16 %v210
  %v1156 = vunpack.c.h.b16 %v210
  %v1157 = vunpack.c.l.b16 %v211
  %v1158 = vunpack.c.h.b16 %v211
  %v1159 = vunpack.c.l.b16 %v212
  %v1160 = vunpack.c.h.b16 %v212
  %v1161 = vunpack.c.l.b16 %v213
  %v1162 = vunpack.c.h.b16 %v213
  %v1163 = vunpack.c.l.b16 %v214
  %v1164 = vunpack.c.h.b16 %v214
  %v1165 = vunpack.c.l.b16 %v215
  %v1166 = vunpack.c.h.b16 %v215
  %v1167 = vunpack.c.l.b16 %v216
  %v1168 = vunpack.c.h.b16 %v216
  %v1169 = vunpack.c.l.b16 %v217
  %v1170 = vunpack.c.h.b16 %v217
  %v1171 = vunpack.c.l.b16 %v218
  %v1172 = vunpack.c.h.b16 %v218
  %v1173 = vunpack.c.l.b16 %v219
  %v1174 = vunpack.c.h.b16 %v219
  %v1175 = vunpack.c.l.b16 %v220
  %v1176 = vunpack.c.h.b16 %v220
  %v1177 = vunpack.c.l.b16 %v221
  %v1178 = vunpack.c.h.b16 %v221
  %v1179 = vunpack.c.l.b16 %v222
  %v1180 = vunpack.c.h.b16 %v222
  %v1181 = vunpack.c.l.b16 %v223
  %v1182 = vunpack.c.h.b16 %v223
  %v1183 = vunpack.c.l.b16 %v224
  %v1184 = vunpack.c.h.b16 %v224
  %v1185 = vunpack.c.l.b16 %v225
  %v1186 = vunpack.c.h.b16 %v225
  %v1187 = vunpack.c.l.b16 %v226
  %v1188 = vunpack.c.h.b16 %v226
  %v1189 = vunpack.c.l.b16 %v227
  %v1190 = vunpack.c.h.b16 %v227
  %v1191 = vunpack.c.l.b16 %v228
  %v1192 = vunpack.c.h.b16 %v228
  %v1193 = vunpack.c.l.b16 %v229
  %v1194 = vunpack.c.h.b16 %v229
  %v1195 = vunpack.c.l.b16 %v230
  %v1196 = vunpack.c.h.b16 %v230
  %v1197 = vunpack.c.l.b16 %v231
  %v1198 = vunpack.c.h.b16 %v231
  %v1199 = vunpack.c.l.b16 %v232
  %v1200 = vunpack.c.h.b16 %v232
  %v1201 = vunpack.c.l.b16 %v233
  %v1202 = vunpack.c.h.b16 %v233
  %v1203 = vunpack.c.l.b16 %v234
  %v1204 = vunpack.c.h.b16 %v234
  %v1205 = vunpack.c.l.b16 %v235
  %v1206 = vunpack.c.h.b16 %v235
  %v1207 = vunpack.c.l.b16 %v236
  %v1208 = vunpack.c.h.b16 %v236
  %v1209 = vunpack.c.l.b16 %v237
  %v1210 = vunpack.c.h.b16 %v237
  %v1211 = vunpack.c.l.b16 %v238
  %v1212 = vunpack.c.h.b16 %v238
  %v1213 = vunpack.c.l.b16 %v239
  %v1214 = vunpack.c.h.b16 %v239
  %v1215 = vunpack.c.l.b16 %v240
  %v1216 = vunpack.c.h.b16 %v240
  %v1217 = vunpack.c.l.b16 %v241
  %v1218 = vunpack.c.h.b16 %v241
  %v1219 = vunpack.c.l.b16 %v242
  %v1220 = vunpack.c.h.b16 %v242
  %v1221 = vunpack.c.l.b16 %v243
  %v1222 = vunpack.c.h.b16 %v243
  %v1223 = vunpack.c.l.b16 %v244
  %v1224 = vunpack.c.h.b16 %v244
  %v1225 = vunpack.c.l.b16 %v245
  %v1226 = vunpack.c.h.b16 %v245
  %v1227 = vunpack.c.l.b16 %v246
  %v1228 = vunpack.c.h.b16 %v246
  %v1229 = vunpack.c.l.b16 %v247
  %v1230 = vunpack.c.h.b16 %v247
  %v1231 = vunpack.c.l.b16 %v248
  %v1232 = vunpack.c.h.b16 %v248
  %v1233 = vunpack.c.l.b16 %v249
  %v1234 = vunpack.c.h.b16 %v249
  %v1235 = vunpack.c.l.b16 %v250
  %v1236 = vunpack.c.h.b16 %v250
  %v1237 = vunpack.c.l.b16 %v251
  %v1238 = vunpack.c.h.b16 %v251
  %v1239 = vunpack.c.l.b16 %v252
  %v1240 = vunpack.c.h.b16 %v252
  %v1241 = vunpack.c.l.b16 %v253
  %v1242 = vunpack.c.h.b16 %v253
  %v1243 = vunpack.c.l.b16 %v254
  %v1244 = vunpack.c.h.b16 %v254
  %v1245 = vunpack.c.l.b16 %v255
  %v1246 = vunpack.c.h.b16 %v255
  %v1247 = vunpack.c.l.b16 %v256
  %v1248 = vunpack.c.h.b16 %v256
  %v1249 = vunpack.c.l.b16 %v257
  %v1250 = vunpack.c.h.b16 %v257
  %v1251 = vunpack.c.l.b16 %v258
  %v1252 = vunpack.c.h.b16 %v258
  %v1253 = vunpack.c.l.b16 %v259
  %v1254 = vunpack.c.h.b16 %v259
  %v1255 = vunpack.c.l.b16 %v260
  %v1256 = vunpack.c.h.b16 %v260
  %v1257 = vunpack.c.l.b16 %v261
  %v1258 = vunpack.c.h.b16 %v261
  %v1259 = vunpack.c.l.b16 %v262
  %v1260 = vunpack.c.h.b16 %v262
  %v1261 = vunpack.c.l.b16 %v263
  %v1262 = vunpack.c.h.b16 %v263
  %v1263 = vunpack.c.l.b16 %v264
  %v1264 = vunpack.c.h.b16 %v264
  %v1265 = vunpack.c.l.b16 %v265
  %v1266 = vunpack.c.h.b16 %v265
  %v1267 = vunpack.c.l.b16 %v266
  %v1268 = vunpack.c.h.b16 %v266
  %v1269 = vunpack.c.l.b16 %v267
  %v1270 = vunpack.c.h.b16 %v267
  %v1271 = vunpack.c.l.b16 %v268
  %v1272 = vunpack.c.h.b16 %v268
  %v1273 = vunpack.c.l.b16 %v269
  %v1274 = vunpack.c.h.b16 %v269
  %v1275 = vunpack.c.l.b16 %v270
  %v1276 = vunpack.c.h.b16 %v270
  %v1277 = vunpack.c.l.b16 %v271
  %v1278 = vunpack.c.h.b16 %v271
  %v1279 = vunpack.c.l.b16 %v272
  %v1280 = vunpack.c.h.b16 %v272
  %v1281 = vunpack.c.l.b16 %v273
  %v1282 = vunpack.c.h.b16 %v273
  %v1283 = vunpack.c.l.b16 %v274
  %v1284 = vunpack.c.h.b16 %v274
  %v1285 = vunpack.c.l.b16 %v275
  %v1286 = vunpack.c.h.b16 %v275
  %v1287 = vunpack.c.l.b16 %v276
  %v1288 = vunpack.c.h.b16 %v276
  %v1289 = vunpack.c.l.b16 %v277
  %v1290 = vunpack.c.h.b16 %v277
  %v1291 = vunpack.c.l.b16 %v278
  %v1292 = vunpack.c.h.b16 %v278
  %v1293 = vunpack.c.l.b16 %v279
  %v1294 = vunpack.c.h.b16 %v279
  %v1295 = vunpack.c.l.b16 %v280
  %v1296 = vunpack.c.h.b16 %v280
  %v1297 = vunpack.c.l.b16 %v281
  %v1298 = vunpack.c.h.b16 %v281
  %v1299 = vunpack.c.l.b16 %v282
  %v1300 = vunpack.c.h.b16 %v282
  %v1301 = vunpack.c.l.b16 %v283
  %v1302 = vunpack.c.h.b16 %v283
  %v1303 = vunpack.c.l.b16 %v284
  %v1304 = vunpack.c.h.b16 %v284
  %v1305 = vunpack.c.l.b16 %v285
  %v1306 = vunpack.c.h.b16 %v285
  %v1307 = vunpack.c.l.b16 %v286
  %v1308 = vunpack.c.h.b16 %v286
  %v1309 = vunpack.c.l.b16 %v287
  %v1310 = vunpack.c.h.b16 %v287
  %v1311 = vunpack.c.l.b16 %v288
  %v1312 = vunpack.c.h.b16 %v288
  %v1313 = vunpack.c.l.b16 %v289
  %v1314 = vunpack.c.h.b16 %v289
  %v1315 = vunpack.c.l.b16 %v290
  %v1316 = vunpack.c.h.b16 %v290
  %v1317 = vunpack.c.l.b16 %v291
  %v1318 = vunpack.c.h.b16 %v291
  %v1319 = vunpack.c.l.b16 %v292
  %v1320 = vunpack.c.h.b16 %v292
  %v1321 = vunpack.c.l.b16 %v293
  %v1322 = vunpack.c.h.b16 %v293
  %v1323 = vunpack.c.l.b16 %v294
  %v1324 = vunpack.c.h.b16 %v294
  %v1325 = vunpack.c.l.b16 %v295
  %v1326 = vunpack.c.h.b16 %v295
  %v1327 = vunpack.c.l.b16 %v296
  %v1328 = vunpack.c.h.b16 %v296
  %v1329 = vunpack.c.l.b16 %v297
  %v1330 = vunpack.c.h.b16 %v297
  %v1331 = vunpack.c.l.b16 %v298
  %v1332 = vunpack.c.h.b16 %v298
  %v1333 = vunpack.c.l.b16 %v299
  %v1334 = vunpack.c.h.b16 %v299
  %v1335 = vunpack.c.l.b16 %v300
  %v1336 = vunpack.c.h.b16 %v300
  %v1337 = vunpack.c.l.b16 %v301
  %v1338 = vunpack.c.h.b16 %v301
  %v1339 = vunpack.c.l.b16 %v302
  %v1340 = vunpack.c.h.b16 %v302
  %v1341 = vunpack.c.l.b16 %v303
  %v1342 = vunpack.c.h.b16 %v303
  %v1343 = vunpack.c.l.b16 %v304
  %v1344 = vunpack.c.h.b16 %v304
  %v1345 = vunpack.c.l.b16 %v305
  %v1346 = vunpack.c.h.b16 %v305
  %v1347 = vunpack.c.l.b16 %v306
  %v1348 = vunpack.c.h.b16 %v306
  %v1349 = vunpack.c.l.b16 %v307
  %v1350 = vunpack.c.h.b16 %v307
  %v1351 = vunpack.c.l.b16 %v308
  %v1352 = vunpack.c.h.b16 %v308
  %v1353 = vunpack.c.l.b16 %v309
  %v1354 = vunpack.c.h.b16 %v309
  %v1355 = vunpack.c.l.b16 %v310
  %v1356 = vunpack.c.h.b16 %v310
  %v1357 = vunpack.c.l.b16 %v311
  %v1358 = vunpack.c.h.b16 %v311
  %v1359 = vunpack.c.l.b16 %v312
  %v1360 = vunpack.c.h.b16 %v312
  %v1361 = vunpack.c.l.b16 %v313
  %v1362 = vunpack.c.h.b16 %v313
  %v1363 = vunpack.c.l.b16 %v314
  %v1364 = vunpack.c.h.b16 %v314
  %v1365 = vunpack.c.l.b16 %v315
  %v1366 = vunpack.c.h.b16 %v315
  %v1367 = vunpack.c.l.b16 %v316
  %v1368 = vunpack.c.h.b16 %v316
  %v1369 = vunpack.c.l.b16 %v317
  %v1370 = vunpack.c.h.b16 %v317
  %v1371 = vunpack.c.l.b16 %v318
  %v1372 = vunpack.c.h.b16 %v318
  %v1373 = vunpack.c.l.b16 %v319
  %v1374 = vunpack.c.h.b16 %v319
  %v1375 = vunpack.c.l.b16 %v320
  %v1376 = vunpack.c.h.b16 %v320
  %v1377 = vunpack.c.l.b16 %v321
  %v1378 = vunpack.c.h.b16 %v321
  %v1379 = vunpack.c.l.b16 %v322
  %v1380 = vunpack.c.h.b16 %v322
  %v1381 = vunpack.c.l.b16 %v323
  %v1382 = vunpack.c.h.b16 %v323
  %v1383 = vunpack.c.l.b16 %v324
  %v1384 = vunpack.c.h.b16 %v324
  %v1385 = vunpack.c.l.b16 %v325
  %v1386 = vunpack.c.h.b16 %v325
  %v1387 = vunpack.c.l.b16 %v326
  %v1388 = vunpack.c.h.b16 %v326
  %v1389 = vunpack.c.l.b16 %v327
  %v1390 = vunpack.c.h.b16 %v327
  %v1391 = vunpack.c.l.b16 %v328
  %v1392 = vunpack.c.h.b16 %v328
  %v1393 = vunpack.c.l.b16 %v329
  %v1394 = vunpack.c.h.b16 %v329
  %v1395 = vunpack.c.l.b16 %v330
  %v1396 = vunpack.c.h.b16 %v330
  %v1397 = vunpack.c.l.b16 %v331
  %v1398 = vunpack.c.h.b16 %v331
  %v1399 = vunpack.c.l.b16 %v332
  %v1400 = vunpack.c.h.b16 %v332
  %v1401 = vunpack.c.l.b16 %v333
  %v1402 = vunpack.c.h.b16 %v333
  %v1403 = vunpack.c.l.b16 %v334
  %v1404 = vunpack.c.h.b16 %v334
  %v1405 = vunpack.c.l.b16 %v335
  %v1406 = vunpack.c.h.b16 %v335
  %v1407 = vunpack.c.l.b16 %v336
  %v1408 = vunpack.c.h.b16 %v336
  %v1409 = vunpack.c.l.b16 %v337
  %v1410 = vunpack.c.h.b16 %v337
  %v1411 = vunpack.c.l.b16 %v338
  %v1412 = vunpack.c.h.b16 %v338
  %v1413 = vunpack.c.l.b16 %v339
  %v1414 = vunpack.c.h.b16 %v339
  %v1415 = vunpack.c.l.b16 %v340
  %v1416 = vunpack.c.h.b16 %v340
  %v1417 = vunpack.c.l.b16 %v341
  %v1418 = vunpack.c.h.b16 %v341
  %v1419 = vunpack.c.l.b16 %v342
  %v1420 = vunpack.c.h.b16 %v342
  %v1421 = vunpack.c.l.b16 %v343
  %v1422 = vunpack.c.h.b16 %v343
  %v1423 = vunpack.c.l.b16 %v344
  %v1424 = vunpack.c.h.b16 %v344
  %v1425 = vunpack.c.l.b16 %v345
  %v1426 = vunpack.c.h.b16 %v345
  %v1427 = vunpack.c.l.b16 %v346
  %v1428 = vunpack.c.h.b16 %v346
  %v1429 = vunpack.c.l.b16 %v347
  %v1430 = vunpack.c.h.b16 %v347
  %v1431 = vunpack.c.l.b16 %v348
  %v1432 = vunpack.c.h.b16 %v348
  %v1433 = vunpack.c.l.b16 %v349
  %v1434 = vunpack.c.h.b16 %v349
  %v1435 = vunpack.c.l.b16 %v350
  %v1436 = vunpack.c.h.b16 %v350
  %v1437 = vunpack.c.l.b16 %v351
  %v1438 = vunpack.c.h.b16 %v351
  %v1439 = vunpack.c.l.b16 %v352
  %v1440 = vunpack.c.h.b16 %v352
  %v1441 = vunpack.c.l.b16 %v353
  %v1442 = vunpack.c.h.b16 %v353
  %v1443 = vunpack.c.l.b16 %v354
  %v1444 = vunpack.c.h.b16 %v354
  %v1445 = vunpack.c.l.b16 %v355
  %v1446 = vunpack.c.h.b16 %v355
  %v1447 = vunpack.c.l.b16 %v356
  %v1448 = vunpack.c.h.b16 %v356
  %v1449 = vunpack.c.l.b16 %v357
  %v1450 = vunpack.c.h.b16 %v357
  %v1451 = vunpack.c.l.b16 %v358
  %v1452 = vunpack.c.h.b16 %v358
  %v1453 = vunpack.c.l.b16 %v359
  %v1454 = vunpack.c.h.b16 %v359
  %v1455 = vunpack.c.l.b16 %v360
  %v1456 = vunpack.c.h.b16 %v360
  %v1457 = vunpack.c.l.b16 %v361
  %v1458 = vunpack.c.h.b16 %v361
  %v1459 = vunpack.c.l.b16 %v362
  %v1460 = vunpack.c.h.b16 %v362
  %v1461 = vunpack.c.l.b16 %v363
  %v1462 = vunpack.c.h.b16 %v363
  %v1463 = vunpack.c.l.b16 %v364
  %v1464 = vunpack.c.h.b16 %v364
  %v1465 = vunpack.c.l.b16 %v365
  %v1466 = vunpack.c.h.b16 %v365
  %v1467 = vunpack.c.l.b16 %v366
  %v1468 = vunpack.c.h.b16 %v366
  %v1469 = vunpack.c.l.b16 %v367
  %v1470 = vunpack.c.h.b16 %v367
  %v1471 = vunpack.c.l.b16 %v368
  %v1472 = vunpack.c.h.b16 %v368
  %v1473 = vunpack.c.l.b16 %v369
  %v1474 = vunpack.c.h.b16 %v369
  %v1475 = vunpack.c.l.b16 %v370
  %v1476 = vunpack.c.h.b16 %v370
  %v1477 = vunpack.c.l.b16 %v371
  %v1478 = vunpack.c.h.b16 %v371
  %v1479 = vunpack.c.l.b16 %v372
  %v1480 = vunpack.c.h.b16 %v372
  %v1481 = vunpack.c.l.b16 %v373
  %v1482 = vunpack.c.h.b16 %v373
  %v1483 = vunpack.c.l.b16 %v374
  %v1484 = vunpack.c.h.b16 %v374
  %v1485 = vunpack.c.l.b16 %v375
  %v1486 = vunpack.c.h.b16 %v375
  %v1487 = vunpack.c.l.b16 %v376
  %v1488 = vunpack.c.h.b16 %v376
  %v1489 = vunpack.c.l.b16 %v377
  %v1490 = vunpack.c.h.b16 %v377
  %v1491 = vunpack.c.l.b16 %v378
  %v1492 = vunpack.c.h.b16 %v378
  %v1493 = vunpack.c.l.b16 %v379
  %v1494 = vunpack.c.h.b16 %v379
  %v1495 = vunpack.c.l.b16 %v380
  %v1496 = vunpack.c.h.b16 %v380
  %v1497 = vunpack.c.l.b16 %v381
  %v1498 = vunpack.c.h.b16 %v381
  %v1499 = vunpack.c.l.b16 %v382
  %v1500 = vunpack.c.h.b16 %v382
  %v1501 = vunpack.c.l.b16 %v383
  %v1502 = vunpack.c.h.b16 %v383
  %v1503 = vunpack.c.l.b16 %v384
  %v1504 = vunpack.c.h.b16 %v384
  %v1505 = vunpack.c.l.b16 %v385
  %v1506 = vunpack.c.h.b16 %v385
  %v1507 = vunpack.c.l.b16 %v386
  %v1508 = vunpack.c.h.b16 %v386
  %v1509 = vunpack.c.l.b16 %v387
  %v1510 = vunpack.c.h.b16 %v387
  %v1511 = vunpack.c.l.b16 %v388
  %v1512 = vunpack.c.h.b16 %v388
  %v1513 = vunpack.c.l.b16 %v389
  %v1514 = vunpack.c.h.b16 %v389
  %v1515 = vunpack.c.l.b16 %v390
  %v1516 = vunpack.c.h.b16 %v390
  %v1517 = vunpack.c.l.b16 %v391
  %v1518 = vunpack.c.h.b16 %v391
  %v1519 = vunpack.c.l.b16 %v392
  %v1520 = vunpack.c.h.b16 %v392
  %v1521 = vunpack.c.l.b16 %v393
  %v1522 = vunpack.c.h.b16 %v393
  %v1523 = vunpack.c.l.b16 %v394
  %v1524 = vunpack.c.h.b16 %v394
  %v1525 = vunpack.c.l.b16 %v395
  %v1526 = vunpack.c.h.b16 %v395
  %v1527 = vunpack.c.l.b16 %v396
  %v1528 = vunpack.c.h.b16 %v396
  %v1529 = vunpack.c.l.b16 %v397
  %v1530 = vunpack.c.h.b16 %v397
  %v1531 = vunpack.c.l.b16 %v398
  %v1532 = vunpack.c.h.b16 %v398
  %v1533 = vunpack.c.l.b16 %v399
  %v1534 = vunpack.c.h.b16 %v399
  %v1535 = vunpack.c.l.b16 %v400
  %v1536 = vunpack.c.h.b16 %v400
  %v1537 = vunpack.c.l.b16 %v401
  %v1538 = vunpack.c.h.b16 %v401
  %v1539 = vunpack.c.l.b16 %v402
  %v1540 = vunpack.c.h.b16 %v402
  %v1541 = vunpack.c.l.b16 %v403
  %v1542 = vunpack.c.h.b16 %v403
  %v1543 = vunpack.c.l.b16 %v404
  %v1544 = vunpack.c.h.b16 %v404
  %v1545 = vunpack.c.l.b16 %v405
  %v1546 = vunpack.c.h.b16 %v405
  %v1547 = vunpack.c.l.b16 %v406
  %v1548 = vunpack.c.h.b16 %v406
  %v1549 = vunpack.c.l.b16 %v407
  %v1550 = vunpack.c.h.b16 %v407
  %v1551 = vunpack.c.l.b16 %v408
  %v1552 = vunpack.c.h.b16 %v408
  %v1553 = vunpack.c.l.b16 %v409
  %v1554 = vunpack.c.h.b16 %v409
  %v1555 = vunpack.c.l.b16 %v410
  %v1556 = vunpack.c.h.b16 %v410
  %v1557 = vunpack.c.l.b16 %v411
  %v1558 = vunpack.c.h.b16 %v411
  %v1559 = vunpack.c.l.b16 %v412
  %v1560 = vunpack.c.h.b16 %v412
  %v1561 = vunpack.c.l.b16 %v413
  %v1562 = vunpack.c.h.b16 %v413
  %v1563 = vunpack.c.l.b16 %v414
  %v1564 = vunpack.c.h.b16 %v414
  %v1565 = vunpack.c.l.b16 %v415
  %v1566 = vunpack.c.h.b16 %v415
  %v1567 = vunpack.c.l.b16 %v416
  %v1568 = vunpack.c.h.b16 %v416
  %v1569 = vunpack.c.l.b16 %v417
  %v1570 = vunpack.c.h.b16 %v417
  %v1571 = vunpack.c.l.b16 %v418
  %v1572 = vunpack.c.h.b16 %v418
  %v1573 = vunpack.c.l.b16 %v419
  %v1574 = vunpack.c.h.b16 %v419
  %v1575 = vunpack.c.l.b16 %v420
  %v1576 = vunpack.c.h.b16 %v420
  %v1577 = vunpack.c.l.b16 %v421
  %v1578 = vunpack.c.h.b16 %v421
  %v1579 = vunpack.c.l.b16 %v422
  %v1580 = vunpack.c.h.b16 %v422
  %v1581 = vunpack.c.l.b16 %v423
  %v1582 = vunpack.c.h.b16 %v423
  %v1583 = vunpack.c.l.b16 %v424
  %v1584 = vunpack.c.h.b16 %v424
  %v1585 = vunpack.c.l.b16 %v425
  %v1586 = vunpack.c.h.b16 %v425
  %v1587 = vunpack.c.l.b16 %v426
  %v1588 = vunpack.c.h.b16 %v426
  %v1589 = vunpack.c.l.b16 %v427
  %v1590 = vunpack.c.h.b16 %v427
  %v1591 = vunpack.c.l.b16 %v428
  %v1592 = vunpack.c.h.b16 %v428
  %v1593 = vunpack.c.l.b16 %v429
  %v1594 = vunpack.c.h.b16 %v429
  %v1595 = vunpack.c.l.b16 %v430
  %v1596 = vunpack.c.h.b16 %v430
  %v1597 = vunpack.c.l.b16 %v431
  %v1598 = vunpack.c.h.b16 %v431
  %v1599 = vunpack.c.l.b16 %v432
  %v1600 = vunpack.c.h.b16 %v432
  %v1601 = vunpack.c.l.b16 %v433
  %v1602 = vunpack.c.h.b16 %v433
  %v1603 = vunpack.c.l.b16 %v434
  %v1604 = vunpack.c.h.b16 %v434
  %v1605 = vunpack.c.l.b16 %v435
  %v1606 = vunpack.c.h.b16 %v435
  %v1607 = vunpack.c.l.b16 %v436
  %v1608 = vunpack.c.h.b16 %v436
  %v1609 = vunpack.c.l.b16 %v437
  %v1610 = vunpack.c.h.b16 %v437
  %v1611 = vunpack.c.l.b16 %v438
  %v1612 = vunpack.c.h.b16 %v438
  %v1613 = vunpack.c.l.b16 %v439
  %v1614 = vunpack.c.h.b16 %v439
  %v1615 = vunpack.c.l.b16 %v440
  %v1616 = vunpack.c.h.b16 %v440
  %v1617 = vunpack.c.l.b16 %v441
  %v1618 = vunpack.c.h.b16 %v441
  %v1619 = vunpack.c.l.b16 %v442
  %v1620 = vunpack.c.h.b16 %v442
  %v1621 = vunpack.c.l.b16 %v443
  %v1622 = vunpack.c.h.b16 %v443
  %v1623 = vunpack.c.l.b16 %v444
  %v1624 = vunpack.c.h.b16 %v444
  %v1625 = vunpack.c.l.b16 %v445
  %v1626 = vunpack.c.h.b16 %v445
  %v1627 = vunpack.c.l.b16 %v446
  %v1628 = vunpack.c.h.b16 %v446
  %v1629 = vpack.c.b16 %v869, %v861
  %v1630 = vpack.c.b16 %v870, %v862
  %v1631 = vpack.c.b16 %v871, %v863
  %v1632 = vpack.c.b16 %v872, %v864
  %v1633 = vpack.c.b16 %v873, %v865
  %v1634 = vpack.c.b16 %v874, %v866
  %v1635 = vpack.c.b16 %v875, %v867
  %v1636 = vpack.c.b16 %v876, %v868
  %v1637 = vpack.c.b16 %v885, %v877
  %v1638 = vpack.c.b16 %v886, %v878
  %v1639 = vpack.c.b16 %v887, %v879
  %v1640 = vpack.c.b16 %v888, %v880
  %v1641 = vpack.c.b16 %v889, %v881
  %v1642 = vpack.c.b16 %v890, %v882
  %v1643 = vpack.c.b16 %v891, %v883
  %v1644 = vpack.c.b16 %v892, %v884
  %v1645 = vpack.c.b16 %v901, %v893
  %v1646 = vpack.c.b16 %v902, %v894
  %v1647 = vpack.c.b16 %v903, %v895
  %v1648 = vpack.c.b16 %v904, %v896
  %v1649 = vpack.c.b16 %v905, %v897
  %v1650 = vpack.c.b16 %v906, %v898
  %v1651 = vpack.c.b16 %v907, %v899
  %v1652 = vpack.c.b16 %v908, %v900
  %v1653 = vpack.c.b16 %v917, %v909
  %v1654 = vpack.c.b16 %v918, %v910
  %v1655 = vpack.c.b16 %v919, %v911
  %v1656 = vpack.c.b16 %v920, %v912
  %v1657 = vpack.c.b16 %v921, %v913
  %v1658 = vpack.c.b16 %v922, %v914
  %v1659 = vpack.c.b16 %v923, %v915
  %v1660 = vpack.c.b16 %v924, %v916
  %v1661 = vpack.c.b16 %v933, %v925
  %v1662 = vpack.c.b16 %v934, %v926
  %v1663 = vpack.c.b16 %v935, %v927
  %v1664 = vpack.c.b16 %v936, %v928
  %v1665 = vpack.c.b16 %v937, %v929
  %v1666 = vpack.c.b16 %v938, %v930
  %v1667 = vpack.c.b16 %v939, %v931
  %v1668 = vpack.c.b16 %v940, %v932
  %v1669 = vpack.c.b16 %v949, %v941
  %v1670 = vpack.c.b16 %v950, %v942
  %v1671 = vpack.c.b16 %v951, %v943
  %v1672 = vpack.c.b16 %v952, %v944
  %v1673 = vpack.c.b16 %v953, %v945
  %v1674 = vpack.c.b16 %v954, %v946
  %v1675 = vpack.c.b16 %v955, %v947
  %v1676 = vpack.c.b16 %v956, %v948
  %v1677 = vpack.c.b16 %v965, %v957
  %v1678 = vpack.c.b16 %v966, %v958
  %v1679 = vpack.c.b16 %v967, %v959
  %v1680 = vpack.c.b16 %v968, %v960
  %v1681 = vpack.c.b16 %v969, %v961
  %v1682 = vpack.c.b16 %v970, %v962
  %v1683 = vpack.c.b16 %v971, %v963
  %v1684 = vpack.c.b16 %v972, %v964
  %v1685 = vpack.c.b16 %v981, %v973
  %v1686 = vpack.c.b16 %v982, %v974
  %v1687 = vpack.c.b16 %v983, %v975
  %v1688 = vpack.c.b16 %v984, %v976
  %v1689 = vpack.c.b16 %v985, %v977
  %v1690 = vpack.c.b16 %v986, %v978
  %v1691 = vpack.c.b16 %v987, %v979
  %v1692 = vpack.c.b16 %v988, %v980
  %v1693 = vpack.c.b16 %v997, %v989
  %v1694 = vpack.c.b16 %v998, %v990
  %v1695 = vpack.c.b16 %v999, %v991
  %v1696 = vpack.c.b16 %v1000, %v992
  %v1697 = vpack.c.b16 %v1001, %v993
  %v1698 = vpack.c.b16 %v1002, %v994
  %v1699 = vpack.c.b16 %v1003, %v995
  %v1700 = vpack.c.b16 %v1004, %v996
  %v1701 = vpack.c.b16 %v1013, %v1005
  %v1702 = vpack.c.b16 %v1014, %v1006
  %v1703 = vpack.c.b16 %v1015, %v1007
  %v1704 = vpack.c.b16 %v1016, %v1008
  %v1705 = vpack.c.b16 %v1017, %v1009
  %v1706 = vpack.c.b16 %v1018, %v1010
  %v1707 = vpack.c.b16 %v1019, %v1011
  %v1708 = vpack.c.b16 %v1020, %v1012
  %v1709 = vpack.c.b16 %v1029, %v1021
  %v1710 = vpack.c.b16 %v1030, %v1022
  %v1711 = vpack.c.b16 %v1031, %v1023
  %v1712 = vpack.c.b16 %v1032, %v1024
  %v1713 = vpack.c.b16 %v1033, %v1025
  %v1714 = vpack.c.b16 %v1034, %v1026
  %v1715 = vpack.c.b16 %v1035, %v1027
  %v1716 = vpack.c.b16 %v1036, %v1028
  %v1717 = vpack.c.b16 %v1045, %v1037
  %v1718 = vpack.c.b16 %v1046, %v1038
  %v1719 = vpack.c.b16 %v1047, %v1039
  %v1720 = vpack.c.b16 %v1048, %v1040
  %v1721 = vpack.c.b16 %v1049, %v1041
  %v1722 = vpack.c.b16 %v1050, %v1042
  %v1723 = vpack.c.b16 %v1051, %v1043
  %v1724 = vpack.c.b16 %v1052, %v1044
  %v1725 = vpack.c.b16 %v1061, %v1053
  %v1726 = vpack.c.b16 %v1062, %v1054
  %v1727 = vpack.c.b16 %v1063, %v1055
  %v1728 = vpack.c.b16 %v1064, %v1056
  %v1729 = vpack.c.b16 %v1065, %v1057
  %v1730 = vpack.c.b16 %v1066, %v1058
  %v1731 = vpack.c.b16 %v1067, %v1059
  %v1732 = vpack.c.b16 %v1068, %v1060
  %v1733 = vpack.c.b16 %v1077, %v1069
  %v1734 = vpack.c.b16 %v1078, %v1070
  %v1735 = vpack.c.b16 %v1079, %v1071
  %v1736 = vpack.c.b16 %v1080, %v1072
  %v1737 = vpack.c.b16 %v1081, %v1073
  %v1738 = vpack.c.b16 %v1082, %v1074
  %v1739 = vpack.c.b16 %v1083, %v1075
  %v1740 = vpack.c.b16 %v1084, %v1076
  %v1741 = vpack.c.b16 %v1093, %v1085
  %v1742 = vpack.c.b16 %v1094, %v1086
  %v1743 = vpack.c.b16 %v1095, %v1087
  %v1744 = vpack.c.b16 %v1096, %v1088
  %v1745 = vpack.c.b16 %v1097, %v1089
  %v1746 = vpack.c.b16 %v1098, %v1090
  %v1747 = vpack.c.b16 %v1099, %v1091
  %v1748 = vpack.c.b16 %v1100, %v1092
  %v1749 = vpack.c.b16 %v1109, %v1101
  %v1750 = vpack.c.b16 %v1110, %v1102
  %v1751 = vpack.c.b16 %v1111, %v1103
  %v1752 = vpack.c.b16 %v1112, %v1104
  %v1753 = vpack.c.b16 %v1113, %v1105
  %v1754 = vpack.c.b16 %v1114, %v1106
  %v1755 = vpack.c.b16 %v1115, %v1107
  %v1756 = vpack.c.b16 %v1116, %v1108
  %v1757 = vpack.c.b16 %v1125, %v1117
  %v1758 = vpack.c.b16 %v1126, %v1118
  %v1759 = vpack.c.b16 %v1127, %v1119
  %v1760 = vpack.c.b16 %v1128, %v1120
  %v1761 = vpack.c.b16 %v1129, %v1121
  %v1762 = vpack.c.b16 %v1130, %v1122
  %v1763 = vpack.c.b16 %v1131, %v1123
  %v1764 = vpack.c.b16 %v1132, %v1124
  %v1765 = vpack.c.b16 %v1141, %v1133
  %v1766 = vpack.c.b16 %v1142, %v1134
  %v1767 = vpack.c.b16 %v1143, %v1135
  %v1768 = vpack.c.b16 %v1144, %v1136
  %v1769 = vpack.c.b16 %v1145, %v1137
  %v1770 = vpack.c.b16 %v1146, %v1138
  %v1771 = vpack.c.b16 %v1147, %v1139
  %v1772 = vpack.c.b16 %v1148, %v1140
  %v1773 = vpack.c.b16 %v1157, %v1149
  %v1774 = vpack.c.b16 %v1158, %v1150
  %v1775 = vpack.c.b16 %v1159, %v1151
  %v1776 = vpack.c.b16 %v1160, %v1152
  %v1777 = vpack.c.b16 %v1161, %v1153
  %v1778 = vpack.c.b16 %v1162, %v1154
  %v1779 = vpack.c.b16 %v1163, %v1155
  %v1780 = vpack.c.b16 %v1164, %v1156
  %v1781 = vpack.c.b16 %v1173, %v1165
  %v1782 = vpack.c.b16 %v1174, %v1166
  %v1783 = vpack.c.b16 %v1175, %v1167
  %v1784 = vpack.c.b16 %v1176, %v1168
  %v1785 = vpack.c.b16 %v1177, %v1169
  %v1786 = vpack.c.b16 %v1178, %v1170
  %v1787 = vpack.c.b16 %v1179, %v1171
  %v1788 = vpack.c.b16 %v1180, %v1172
  %v1789 = vpack.c.b16 %v1189, %v1181
  %v1790 = vpack.c.b16 %v1190, %v1182
  %v1791 = vpack.c.b16 %v1191, %v1183
  %v1792 = vpack.c.b16 %v1192, %v1184
  %v1793 = vpack.c.b16 %v1193, %v1185
  %v1794 = vpack.c.b16 %v1194, %v1186
  %v1795 = vpack.c.b16 %v1195, %v1187
  %v1796 = vpack.c.b16 %v1196, %v1188
  %v1797 = vpack.c.b16 %v1205, %v1197
  %v1798 = vpack.c.b16 %v1206, %v1198
  %v1799 = vpack.c.b16 %v1207, %v1199
  %v1800 = vpack.c.b16 %v1208, %v1200
  %v1801 = vpack.c.b16 %v1209, %v1201
  %v1802 = vpack.c.b16 %v1210, %v1202
  %v1803 = vpack.c.b16 %v1211, %v1203
  %v1804 = vpack.c.b16 %v1212, %v1204
  %v1805 = vpack.c.b16 %v1221, %v1213
  %v1806 = vpack.c.b16 %v1222, %v1214
  %v1807 = vpack.c.b16 %v1223, %v1215
  %v1808 = vpack.c.b16 %v1224, %v1216
  %v1809 = vpack.c.b16 %v1225, %v1217
  %v1810 = vpack.c.b16 %v1226, %v1218
  %v1811 = vpack.c.b16 %v1227, %v1219
  %v1812 = vpack.c.b16 %v1228, %v1220
  %v1813 = vpack.c.b16 %v1237, %v1229
  %v1814 = vpack.c.b16 %v1238, %v1230
  %v1815 = vpack.c.b16 %v1239, %v1231
  %v1816 = vpack.c.b16 %v1240, %v1232
  %v1817 = vpack.c.b16 %v1241, %v1233
  %v1818 = vpack.c.b16 %v1242, %v1234
  %v1819 = vpack.c.b16 %v1243, %v1235
  %v1820 = vpack.c.b16 %v1244, %v1236
  %v1821 = vpack.c.b16 %v1253, %v1245
  %v1822 = vpack.c.b16 %v1254, %v1246
  %v1823 = vpack.c.b16 %v1255, %v1247
  %v1824 = vpack.c.b16 %v1256, %v1248
  %v1825 = vpack.c.b16 %v1257, %v1249
  %v1826 = vpack.c.b16 %v1258, %v1250
  %v1827 = vpack.c.b16 %v1259, %v1251
  %v1828 = vpack.c.b16 %v1260, %v1252
  %v1829 = vpack.c.b16 %v1269, %v1261
  %v1830 = vpack.c.b16 %v1270, %v1262
  %v1831 = vpack.c.b16 %v1271, %v1263
  %v1832 = vpack.c.b16 %v1272, %v1264
  %v1833 = vpack.c.b16 %v1273, %v1265
  %v1834 = vpack.c.b16 %v1274, %v1266
  %v1835 = vpack.c.b16 %v1275, %v1267
  %v1836 = vpack.c.b16 %v1276, %v1268
  %v1837 = vpack.c.b16 %v1285, %v1277
  %v1838 = vpack.c.b16 %v1286, %v1278
  %v1839 = vpack.c.b16 %v1287, %v1279
  %v1840 = vpack.c.b16 %v1288, %v1280
  %v1841 = vpack.c.b16 %v1289, %v1281
  %v1842 = vpack.c.b16 %v1290, %v1282
  %v1843 = vpack.c.b16 %v1291, %v1283
  %v1844 = vpack.c.b16 %v1292, %v1284
  %v1845 = vpack.c.b16 %v1301, %v1293
  %v1846 = vpack.c.b16 %v1302, %v1294
  %v1847 = vpack.c.b16 %v1303, %v1295
  %v1848 = vpack.c.b16 %v1304, %v1296
  %v1849 = vpack.c.b16 %v1305, %v1297
  %v1850 = vpack.c.b16 %v1306, %v1298
  %v1851 = vpack.c.b16 %v1307, %v1299
  %v1852 = vpack.c.b16 %v1308, %v1300
  %v1853 = vpack.c.b16 %v1317, %v1309
  %v1854 = vpack.c.b16 %v1318, %v1310
  %v1855 = vpack.c.b16 %v1319, %v1311
  %v1856 = vpack.c.b16 %v1320, %v1312
  %v1857 = vpack.c.b16 %v1321, %v1313
  %v1858 = vpack.c.b16 %v1322, %v1314
  %v1859 = vpack.c.b16 %v1323, %v1315
  %v1860 = vpack.c.b16 %v1324, %v1316
  %v1861 = vpack.c.b16 %v1333, %v1325
  %v1862 = vpack.c.b16 %v1334, %v1326
  %v1863 = vpack.c.b16 %v1335, %v1327
  %v1864 = vpack.c.b16 %v1336, %v1328
  %v1865 = vpack.c.b16 %v1337, %v1329
  %v1866 = vpack.c.b16 %v1338, %v1330
  %v1867 = vpack.c.b16 %v1339, %v1331
  %v1868 = vpack.c.b16 %v1340, %v1332
  %v1869 = vpack.c.b16 %v1349, %v1341
  %v1870 = vpack.c.b16 %v1350, %v1342
  %v1871 = vpack.c.b16 %v1351, %v1343
  %v1872 = vpack.c.b16 %v1352, %v1344
  %v1873 = vpack.c.b16 %v1353, %v1345
  %v1874 = vpack.c.b16 %v1354, %v1346
  %v1875 = vpack.c.b16 %v1355, %v1347
  %v1876 = vpack.c.b16 %v1356, %v1348
  %v1877 = vpack.c.b16 %v1365, %v1357
  %v1878 = vpack.c.b16 %v1366, %v1358
  %v1879 = vpack.c.b16 %v1367, %v1359
  %v1880 = vpack.c.b16 %v1368, %v1360
  %v1881 = vpack.c.b16 %v1369, %v1361
  %v1882 = vpack.c.b16 %v1370, %v1362
  %v1883 = vpack.c.b16 %v1371, %v1363
  %v1884 = vpack.c.b16 %v1372, %v1364
  %v1885 = vpack.c.b16 %v1381, %v1373
  %v1886 = vpack.c.b16 %v1382, %v1374
  %v1887 = vpack.c.b16 %v1383, %v1375
  %v1888 = vpack.c.b16 %v1384, %v1376
  %v1889 = vpack.c.b16 %v1385, %v1377
  %v1890 = vpack.c.b16 %v1386, %v1378
  %v1891 = vpack.c.b16 %v1387, %v1379
  %v1892 = vpack.c.b16 %v1388, %v1380
  %v1893 = vpack.c.b16 %v1397, %v1389
  %v1894 = vpack.c.b16 %v1398, %v1390
  %v1895 = vpack.c.b16 %v1399, %v1391
  %v1896 = vpack.c.b16 %v1400, %v1392
  %v1897 = vpack.c.b16 %v1401, %v1393
  %v1898 = vpack.c.b16 %v1402, %v1394
  %v1899 = vpack.c.b16 %v1403, %v1395
  %v1900 = vpack.c.b16 %v1404, %v1396
  %v1901 = vpack.c.b16 %v1413, %v1405
  %v1902 = vpack.c.b16 %v1414, %v1406
  %v1903 = vpack.c.b16 %v1415, %v1407
  %v1904 = vpack.c.b16 %v1416, %v1408
  %v1905 = vpack.c.b16 %v1417, %v1409
  %v1906 = vpack.c.b16 %v1418, %v1410
  %v1907 = vpack.c.b16 %v1419, %v1411
  %v1908 = vpack.c.b16 %v1420, %v1412
  %v1909 = vpack.c.b16 %v1429, %v1421
  %v1910 = vpack.c.b16 %v1430, %v1422
  %v1911 = vpack.c.b16 %v1431, %v1423
  %v1912 = vpack.c.b16 %v1432, %v1424
  %v1913 = vpack.c.b16 %v1433, %v1425
  %v1914 = vpack.c.b16 %v1434, %v1426
  %v1915 = vpack.c.b16 %v1435, %v1427
  %v1916 = vpack.c.b16 %v1436, %v1428
  %v1917 = vpack.c.b16 %v1445, %v1437
  %v1918 = vpack.c.b16 %v1446, %v1438
  %v1919 = vpack.c.b16 %v1447, %v1439
  %v1920 = vpack.c.b16 %v1448, %v1440
  %v1921 = vpack.c.b16 %v1449, %v1441
  %v1922 = vpack.c.b16 %v1450, %v1442
  %v1923 = vpack.c.b16 %v1451, %v1443
  %v1924 = vpack.c.b16 %v1452, %v1444
  %v1925 = vpack.c.b16 %v1461, %v1453
  %v1926 = vpack.c.b16 %v1462, %v1454
  %v1927 = vpack.c.b16 %v1463, %v1455
  %v1928 = vpack.c.b16 %v1464, %v1456
  %v1929 = vpack.c.b16 %v1465, %v1457
  %v1930 = vpack.c.b16 %v1466, %v1458
  %v1931 = vpack.c.b16 %v1467, %v1459
  %v1932 = vpack.c.b16 %v1468, %v1460
  %v1933 = vpack.c.b16 %v1477, %v1469
  %v1934 = vpack.c.b16 %v1478, %v1470
  %v1935 = vpack.c.b16 %v1479, %v1471
  %v1936 = vpack.c.b16 %v1480, %v1472
  %v1937 = vpack.c.b16 %v1481, %v1473
  %v1938 = vpack.c.b16 %v1482, %v1474
  %v1939 = vpack.c.b16 %v1483, %v1475
  %v1940 = vpack.c.b16 %v1484, %v1476
  %v1941 = vpack.c.b16 %v1493, %v1485
  %v1942 = vpack.c.b16 %v1494, %v1486
  %v1943 = vpack.c.b16 %v1495, %v1487
  %v1944 = vpack.c.b16 %v1496, %v1488
  %v1945 = vpack.c.b16 %v1497, %v1489
  %v1946 = vpack.c.b16 %v1498, %v1490
  %v1947 = vpack.c.b16 %v1499, %v1491
  %v1948 = vpack.c.b16 %v1500, %v1492
  %v1949 = vpack.c.b16 %v1509, %v1501
  %v1950 = vpack.c.b16 %v1510, %v1502
  %v1951 = vpack.c.b16 %v1511, %v1503
  %v1952 = vpack.c.b16 %v1512, %v1504
  %v1953 = vpack.c.b16 %v1513, %v1505
  %v1954 = vpack.c.b16 %v1514, %v1506
  %v1955 = vpack.c.b16 %v1515, %v1507
  %v1956 = vpack.c.b16 %v1516, %v1508
  %v1957 = vpack.c.b16 %v1525, %v1517
  %v1958 = vpack.c.b16 %v1526, %v1518
  %v1959 = vpack.c.b16 %v1527, %v1519
  %v1960 = vpack.c.b16 %v1528, %v1520
  %v1961 = vpack.c.b16 %v1529, %v1521
  %v1962 = vpack.c.b16 %v1530, %v1522
  %v1963 = vpack.c.b16 %v1531, %v1523
  %v1964 = vpack.c.b16 %v1532, %v1524
  %v1965 = vpack.c.b16 %v1541, %v1533
  %v1966 = vpack.c.b16 %v1542, %v1534
  %v1967 = vpack.c.b16 %v1543, %v1535
  %v1968 = vpack.c.b16 %v1544, %v1536
  %v1969 = vpack.c.b16 %v1545, %v1537
  %v1970 = vpack.c.b16 %v1546, %v1538
  %v1971 = vpack.c.b16 %v1547, %v1539
  %v1972 = vpack.c.b16 %v1548, %v1540
  %v1973 = vpack.c.b16 %v1557, %v1549
  %v1974 = vpack.c.b16 %v1558, %v1550
  %v1975 = vpack.c.b16 %v1559, %v1551
  %v1976 = vpack.c.b16 %v1560, %v1552
  %v1977 = vpack.c.b16 %v1561, %v1553
  %v1978 = vpack.c.b16 %v1562, %v1554
  %v1979 = vpack.c.b16 %v1563, %v1555
  %v1980 = vpack.c.b16 %v1564, %v1556
  %v1981 = vpack.c.b16 %v1573, %v1565
  %v1982 = vpack.c.b16 %v1574, %v1566
  %v1983 = vpack.c.b16 %v1575, %v1567
  %v1984 = vpack.c.b16 %v1576, %v1568
  %v1985 = vpack.c.b16 %v1577, %v1569
  %v1986 = vpack.c.b16 %v1578, %v1570
  %v1987 = vpack.c.b16 %v1579, %v1571
  %v1988 = vpack.c.b16 %v1580, %v1572
  %v1989 = vpack.c.b16 %v1589, %v1581
  %v1990 = vpack.c.b16 %v1590, %v1582
  %v1991 = vpack.c.b16 %v1591, %v1583
  %v1992 = vpack.c.b16 %v1592, %v1584
  %v1993 = vpack.c.b16 %v1593, %v1585
  %v1994 = vpack.c.b16 %v1594, %v1586
  %v1995 = vpack.c.b16 %v1595, %v1587
  %v1996 = vpack.c.b16 %v1596, %v1588
  %v1997 = vpack.c.b16 %v1605, %v1597
  %v1998 = vpack.c.b16 %v1606, %v1598
  %v1999 = vpack.c.b16 %v1607, %v1599
  %v2000 = vpack.c.b16 %v1608, %v1600
  %v2001 = vpack.c.b16 %v1609, %v1601
  %v2002 = vpack.c.b16 %v1610, %v1602
  %v2003 = vpack.c.b16 %v1611, %v1603
  %v2004 = vpack.c.b16 %v1612, %v1604
  %v2005 = vpack.c.b16 %v1621, %v1613
  %v2006 = vpack.c.b16 %v1622, %v1614
  %v2007 = vpack.c.b16 %v1623, %v1615
  %v2008 = vpack.c.b16 %v1624, %v1616
  %v2009 = vpack.c.b16 %v1625, %v1617
  %v2010 = vpack.c.b16 %v1626, %v1618
  %v2011 = vpack.c.b16 %v1627, %v1619
  %v2012 = vpack.c.b16 %v1628, %v1620
  %2397 = vmatprep.subr.bf16.mxu0 %v1630
  %2398 = vmatpush1.bf16.msra.mxu0 %v1629
  %2399 = vmatprep.subr.bf16.mxu0 %v1638
  %2400 = vmatpush1.bf16.msra.mxu0 %v1637
  %2401 = vmatprep.subr.bf16.mxu0 %v1646
  %2402 = vmatpush1.bf16.msra.mxu0 %v1645
  %2403 = vmatprep.subr.bf16.mxu0 %v1654
  %2404 = vmatpush1.bf16.msra.mxu0 %v1653
  %2405 = vmatprep.subr.bf16.mxu0 %v1662
  %2406 = vmatpush1.bf16.msra.mxu0 %v1661
  %2407 = vmatprep.subr.bf16.mxu0 %v1670
  %2408 = vmatpush1.bf16.msra.mxu0 %v1669
  %2409 = vmatprep.subr.bf16.mxu0 %v1678
  %2410 = vmatpush1.bf16.msra.mxu0 %v1677
  %2411 = vmatprep.subr.bf16.mxu0 %v1686
  %2412 = vmatpush1.bf16.msra.mxu0 %v1685
  %2413 = vmatprep.subr.bf16.mxu0 %v1694
  %2414 = vmatpush1.bf16.msra.mxu0 %v1693
  %2415 = vmatprep.subr.bf16.mxu0 %v1702
  %2416 = vmatpush1.bf16.msra.mxu0 %v1701
  %2417 = vmatprep.subr.bf16.mxu0 %v1710
  %2418 = vmatpush1.bf16.msra.mxu0 %v1709
  %2419 = vmatprep.subr.bf16.mxu0 %v1718
  %2420 = vmatpush1.bf16.msra.mxu0 %v1717
  %2421 = vmatprep.subr.bf16.mxu0 %v1726
  %2422 = vmatpush1.bf16.msra.mxu0 %v1725
  %2423 = vmatprep.subr.bf16.mxu0 %v1734
  %2424 = vmatpush1.bf16.msra.mxu0 %v1733
  %2425 = vmatprep.subr.bf16.mxu0 %v1742
  %2426 = vmatpush1.bf16.msra.mxu0 %v1741
  %2427 = vmatprep.subr.bf16.mxu0 %v1750
  %2428 = vmatpush1.bf16.msra.mxu0 %v1749
  %2429 = vmatprep.mubr.bf16.mxu0 %v466
  %2430 = vmatmul.mubr.bf16.gmra.mrb[0].mxu0 %v465
  %v2431 = vpop.f32.mrb[0].mxu0
  %v2432 = vadd.f32 0.0, %v2431
  %v2433 = vpop.f32.mrb[0].mxu0
  %v2434 = vadd.f32 0.0, %v2433
  %v2435 = vpop.f32.mrb[0].mxu0
  %v2436 = vadd.f32 0.0, %v2435
  %v2437 = vpop.f32.mrb[0].mxu0
  %v2438 = vadd.f32 0.0, %v2437
  %2439 = vdwg.mxu0
  %2440 = vmatprep.subr.bf16.mxu0 %v1758
  %2441 = vmatpush1.bf16.msra.mxu0 %v1757
  %2442 = vmatprep.subr.bf16.mxu0 %v1766
  %2443 = vmatpush1.bf16.msra.mxu0 %v1765
  %2444 = vmatprep.subr.bf16.mxu0 %v1774
  %2445 = vmatpush1.bf16.msra.mxu0 %v1773
  %2446 = vmatprep.subr.bf16.mxu0 %v1782
  %2447 = vmatpush1.bf16.msra.mxu0 %v1781
  %2448 = vmatprep.subr.bf16.mxu0 %v1790
  %2449 = vmatpush1.bf16.msra.mxu0 %v1789
  %2450 = vmatprep.subr.bf16.mxu0 %v1798
  %2451 = vmatpush1.bf16.msra.mxu0 %v1797
  %2452 = vmatprep.subr.bf16.mxu0 %v1806
  %2453 = vmatpush1.bf16.msra.mxu0 %v1805
  %2454 = vmatprep.subr.bf16.mxu0 %v1814
  %2455 = vmatpush1.bf16.msra.mxu0 %v1813
  %2456 = vmatprep.subr.bf16.mxu0 %v1822
  %2457 = vmatpush1.bf16.msra.mxu0 %v1821
  %2458 = vmatprep.subr.bf16.mxu0 %v1830
  %2459 = vmatpush1.bf16.msra.mxu0 %v1829
  %2460 = vmatprep.subr.bf16.mxu0 %v1838
  %2461 = vmatpush1.bf16.msra.mxu0 %v1837
  %2462 = vmatprep.subr.bf16.mxu0 %v1846
  %2463 = vmatpush1.bf16.msra.mxu0 %v1845
  %2464 = vmatprep.subr.bf16.mxu0 %v1854
  %2465 = vmatpush1.bf16.msra.mxu0 %v1853
  %2466 = vmatprep.subr.bf16.mxu0 %v1862
  %2467 = vmatpush1.bf16.msra.mxu0 %v1861
  %2468 = vmatprep.subr.bf16.mxu0 %v1870
  %2469 = vmatpush1.bf16.msra.mxu0 %v1869
  %2470 = vmatprep.subr.bf16.mxu0 %v1878
  %2471 = vmatpush1.bf16.msra.mxu0 %v1877
  %2472 = vmatprep.mubr.bf16.mxu0 %v468
  %2473 = vmatmul.mubr.bf16.gmra.mrb[0].mxu0 %v467
  %v2474 = vpop.f32.mrb[0].mxu0
  %v2475 = vadd.f32 %v2432, %v2474
  %v2476 = vpop.f32.mrb[0].mxu0
  %v2477 = vadd.f32 %v2434, %v2476
  %v2478 = vpop.f32.mrb[0].mxu0
  %v2479 = vadd.f32 %v2436, %v2478
  %v2480 = vpop.f32.mrb[0].mxu0
  %v2481 = vadd.f32 %v2438, %v2480
  %2482 = vdwg.mxu0
  %2483 = vmatprep.subr.bf16.mxu0 %v1886
  %2484 = vmatpush1.bf16.msra.mxu0 %v1885
  %2485 = vmatprep.subr.bf16.mxu0 %v1894
  %2486 = vmatpush1.bf16.msra.mxu0 %v1893
  %2487 = vmatprep.subr.bf16.mxu0 %v1902
  %2488 = vmatpush1.bf16.msra.mxu0 %v1901
  %2489 = vmatprep.subr.bf16.mxu0 %v1910
  %2490 = vmatpush1.bf16.msra.mxu0 %v1909
  %2491 = vmatprep.subr.bf16.mxu0 %v1918
  %2492 = vmatpush1.bf16.msra.mxu0 %v1917
  %2493 = vmatprep.subr.bf16.mxu0 %v1926
  %2494 = vmatpush1.bf16.msra.mxu0 %v1925
  %2495 = vmatprep.subr.bf16.mxu0 %v1934
  %2496 = vmatpush1.bf16.msra.mxu0 %v1933
  %2497 = vmatprep.subr.bf16.mxu0 %v1942
  %2498 = vmatpush1.bf16.msra.mxu0 %v1941
  %2499 = vmatprep.subr.bf16.mxu0 %v1950
  %2500 = vmatpush1.bf16.msra.mxu0 %v1949
  %2501 = vmatprep.subr.bf16.mxu0 %v1958
  %2502 = vmatpush1.bf16.msra.mxu0 %v1957
  %2503 = vmatprep.subr.bf16.mxu0 %v1966
  %2504 = vmatpush1.bf16.msra.mxu0 %v1965
  %2505 = vmatprep.subr.bf16.mxu0 %v1974
  %2506 = vmatpush1.bf16.msra.mxu0 %v1973
  %2507 = vmatprep.subr.bf16.mxu0 %v1982
  %2508 = vmatpush1.bf16.msra.mxu0 %v1981
  %2509 = vmatprep.subr.bf16.mxu0 %v1990
  %2510 = vmatpush1.bf16.msra.mxu0 %v1989
  %2511 = vmatprep.subr.bf16.mxu0 %v1998
  %2512 = vmatpush1.bf16.msra.mxu0 %v1997
  %2513 = vmatprep.subr.bf16.mxu0 %v2006
  %2514 = vmatpush1.bf16.msra.mxu0 %v2005
  %2515 = vmatprep.mubr.bf16.mxu0 %v470
  %2516 = vmatmul.mubr.bf16.gmra.mrb[0].mxu0 %v469
  %v2517 = vpop.f32.mrb[0].mxu0
  %v2518 = vadd.f32 %v2475, %v2517
  %v2519 = vpop.f32.mrb[0].mxu0
  %v2520 = vadd.f32 %v2477, %v2519
  %v2521 = vpop.f32.mrb[0].mxu0
  %v2522 = vadd.f32 %v2479, %v2521
  %v2523 = vpop.f32.mrb[0].mxu0
  %v2524 = vadd.f32 %v2481, %v2523
  %2525 = vdwg.mxu0
  %2526 = vmatprep.subr.bf16.mxu0 %v1632
  %2527 = vmatpush1.bf16.msra.mxu0 %v1631
  %2528 = vmatprep.subr.bf16.mxu0 %v1640
  %2529 = vmatpush1.bf16.msra.mxu0 %v1639
  %2530 = vmatprep.subr.bf16.mxu0 %v1648
  %2531 = vmatpush1.bf16.msra.mxu0 %v1647
  %2532 = vmatprep.subr.bf16.mxu0 %v1656
  %2533 = vmatpush1.bf16.msra.mxu0 %v1655
  %2534 = vmatprep.subr.bf16.mxu0 %v1664
  %2535 = vmatpush1.bf16.msra.mxu0 %v1663
  %2536 = vmatprep.subr.bf16.mxu0 %v1672
  %2537 = vmatpush1.bf16.msra.mxu0 %v1671
  %2538 = vmatprep.subr.bf16.mxu0 %v1680
  %2539 = vmatpush1.bf16.msra.mxu0 %v1679
  %2540 = vmatprep.subr.bf16.mxu0 %v1688
  %2541 = vmatpush1.bf16.msra.mxu0 %v1687
  %2542 = vmatprep.subr.bf16.mxu0 %v1696
  %2543 = vmatpush1.bf16.msra.mxu0 %v1695
  %2544 = vmatprep.subr.bf16.mxu0 %v1704
  %2545 = vmatpush1.bf16.msra.mxu0 %v1703
  %2546 = vmatprep.subr.bf16.mxu0 %v1712
  %2547 = vmatpush1.bf16.msra.mxu0 %v1711
  %2548 = vmatprep.subr.bf16.mxu0 %v1720
  %2549 = vmatpush1.bf16.msra.mxu0 %v1719
  %2550 = vmatprep.subr.bf16.mxu0 %v1728
  %2551 = vmatpush1.bf16.msra.mxu0 %v1727
  %2552 = vmatprep.subr.bf16.mxu0 %v1736
  %2553 = vmatpush1.bf16.msra.mxu0 %v1735
  %2554 = vmatprep.subr.bf16.mxu0 %v1744
  %2555 = vmatpush1.bf16.msra.mxu0 %v1743
  %2556 = vmatprep.subr.bf16.mxu0 %v1752
  %2557 = vmatpush1.bf16.msra.mxu0 %v1751
  %2558 = vmatprep.mubr.bf16.mxu0 %v466
  %2559 = vmatmul.mubr.bf16.gmra.mrb[0].mxu0 %v465
  %v2560 = vpop.f32.mrb[0].mxu0
  %v2561 = vadd.f32 0.0, %v2560
  %v2562 = vpop.f32.mrb[0].mxu0
  %v2563 = vadd.f32 0.0, %v2562
  %v2564 = vpop.f32.mrb[0].mxu0
  %v2565 = vadd.f32 0.0, %v2564
  %v2566 = vpop.f32.mrb[0].mxu0
  %v2567 = vadd.f32 0.0, %v2566
  %2568 = vdwg.mxu0
  %2569 = vmatprep.subr.bf16.mxu0 %v1760
  %2570 = vmatpush1.bf16.msra.mxu0 %v1759
  %2571 = vmatprep.subr.bf16.mxu0 %v1768
  %2572 = vmatpush1.bf16.msra.mxu0 %v1767
  %2573 = vmatprep.subr.bf16.mxu0 %v1776
  %2574 = vmatpush1.bf16.msra.mxu0 %v1775
  %2575 = vmatprep.subr.bf16.mxu0 %v1784
  %2576 = vmatpush1.bf16.msra.mxu0 %v1783
  %2577 = vmatprep.subr.bf16.mxu0 %v1792
  %2578 = vmatpush1.bf16.msra.mxu0 %v1791
  %2579 = vmatprep.subr.bf16.mxu0 %v1800
  %2580 = vmatpush1.bf16.msra.mxu0 %v1799
  %2581 = vmatprep.subr.bf16.mxu0 %v1808
  %2582 = vmatpush1.bf16.msra.mxu0 %v1807
  %2583 = vmatprep.subr.bf16.mxu0 %v1816
  %2584 = vmatpush1.bf16.msra.mxu0 %v1815
  %2585 = vmatprep.subr.bf16.mxu0 %v1824
  %2586 = vmatpush1.bf16.msra.mxu0 %v1823
  %2587 = vmatprep.subr.bf16.mxu0 %v1832
  %2588 = vmatpush1.bf16.msra.mxu0 %v1831
  %2589 = vmatprep.subr.bf16.mxu0 %v1840
  %2590 = vmatpush1.bf16.msra.mxu0 %v1839
  %2591 = vmatprep.subr.bf16.mxu0 %v1848
  %2592 = vmatpush1.bf16.msra.mxu0 %v1847
  %2593 = vmatprep.subr.bf16.mxu0 %v1856
  %2594 = vmatpush1.bf16.msra.mxu0 %v1855
  %2595 = vmatprep.subr.bf16.mxu0 %v1864
  %2596 = vmatpush1.bf16.msra.mxu0 %v1863
  %2597 = vmatprep.subr.bf16.mxu0 %v1872
  %2598 = vmatpush1.bf16.msra.mxu0 %v1871
  %2599 = vmatprep.subr.bf16.mxu0 %v1880
  %2600 = vmatpush1.bf16.msra.mxu0 %v1879
  %2601 = vmatprep.mubr.bf16.mxu0 %v468
  %2602 = vmatmul.mubr.bf16.gmra.mrb[0].mxu0 %v467
  %v2603 = vpop.f32.mrb[0].mxu0
  %v2604 = vadd.f32 %v2561, %v2603
  %v2605 = vpop.f32.mrb[0].mxu0
  %v2606 = vadd.f32 %v2563, %v2605
  %v2607 = vpop.f32.mrb[0].mxu0
  %v2608 = vadd.f32 %v2565, %v2607
  %v2609 = vpop.f32.mrb[0].mxu0
  %v2610 = vadd.f32 %v2567, %v2609
  %2611 = vdwg.mxu0
  %2612 = vmatprep.subr.bf16.mxu0 %v1888
  %2613 = vmatpush1.bf16.msra.mxu0 %v1887
  %2614 = vmatprep.subr.bf16.mxu0 %v1896
  %2615 = vmatpush1.bf16.msra.mxu0 %v1895
  %2616 = vmatprep.subr.bf16.mxu0 %v1904
  %2617 = vmatpush1.bf16.msra.mxu0 %v1903
  %2618 = vmatprep.subr.bf16.mxu0 %v1912
  %2619 = vmatpush1.bf16.msra.mxu0 %v1911
  %2620 = vmatprep.subr.bf16.mxu0 %v1920
  %2621 = vmatpush1.bf16.msra.mxu0 %v1919
  %2622 = vmatprep.subr.bf16.mxu0 %v1928
  %2623 = vmatpush1.bf16.msra.mxu0 %v1927
  %2624 = vmatprep.subr.bf16.mxu0 %v1936
  %2625 = vmatpush1.bf16.msra.mxu0 %v1935
  %2626 = vmatprep.subr.bf16.mxu0 %v1944
  %2627 = vmatpush1.bf16.msra.mxu0 %v1943
  %2628 = vmatprep.subr.bf16.mxu0 %v1952
  %2629 = vmatpush1.bf16.msra.mxu0 %v1951
  %2630 = vmatprep.subr.bf16.mxu0 %v1960
  %2631 = vmatpush1.bf16.msra.mxu0 %v1959
  %2632 = vmatprep.subr.bf16.mxu0 %v1968
  %2633 = vmatpush1.bf16.msra.mxu0 %v1967
  %2634 = vmatprep.subr.bf16.mxu0 %v1976
  %2635 = vmatpush1.bf16.msra.mxu0 %v1975
  %2636 = vmatprep.subr.bf16.mxu0 %v1984
  %2637 = vmatpush1.bf16.msra.mxu0 %v1983
  %2638 = vmatprep.subr.bf16.mxu0 %v1992
  %2639 = vmatpush1.bf16.msra.mxu0 %v1991
  %2640 = vmatprep.subr.bf16.mxu0 %v2000
  %2641 = vmatpush1.bf16.msra.mxu0 %v1999
  %2642 = vmatprep.subr.bf16.mxu0 %v2008
  %2643 = vmatpush1.bf16.msra.mxu0 %v2007
  %2644 = vmatprep.mubr.bf16.mxu0 %v470
  %2645 = vmatmul.mubr.bf16.gmra.mrb[0].mxu0 %v469
  %v2646 = vpop.f32.mrb[0].mxu0
  %v2647 = vadd.f32 %v2604, %v2646
  %v2648 = vpop.f32.mrb[0].mxu0
  %v2649 = vadd.f32 %v2606, %v2648
  %v2650 = vpop.f32.mrb[0].mxu0
  %v2651 = vadd.f32 %v2608, %v2650
  %v2652 = vpop.f32.mrb[0].mxu0
  %v2653 = vadd.f32 %v2610, %v2652
  %2654 = vdwg.mxu0
  %2655 = vmatprep.subr.bf16.mxu0 %v1634
  %2656 = vmatpush1.bf16.msra.mxu0 %v1633
  %2657 = vmatprep.subr.bf16.mxu0 %v1642
  %2658 = vmatpush1.bf16.msra.mxu0 %v1641
  %2659 = vmatprep.subr.bf16.mxu0 %v1650
  %2660 = vmatpush1.bf16.msra.mxu0 %v1649
  %2661 = vmatprep.subr.bf16.mxu0 %v1658
  %2662 = vmatpush1.bf16.msra.mxu0 %v1657
  %2663 = vmatprep.subr.bf16.mxu0 %v1666
  %2664 = vmatpush1.bf16.msra.mxu0 %v1665
  %2665 = vmatprep.subr.bf16.mxu0 %v1674
  %2666 = vmatpush1.bf16.msra.mxu0 %v1673
  %2667 = vmatprep.subr.bf16.mxu0 %v1682
  %2668 = vmatpush1.bf16.msra.mxu0 %v1681
  %2669 = vmatprep.subr.bf16.mxu0 %v1690
  %2670 = vmatpush1.bf16.msra.mxu0 %v1689
  %2671 = vmatprep.subr.bf16.mxu0 %v1698
  %2672 = vmatpush1.bf16.msra.mxu0 %v1697
  %2673 = vmatprep.subr.bf16.mxu0 %v1706
  %2674 = vmatpush1.bf16.msra.mxu0 %v1705
  %2675 = vmatprep.subr.bf16.mxu0 %v1714
  %2676 = vmatpush1.bf16.msra.mxu0 %v1713
  %2677 = vmatprep.subr.bf16.mxu0 %v1722
  %2678 = vmatpush1.bf16.msra.mxu0 %v1721
  %2679 = vmatprep.subr.bf16.mxu0 %v1730
  %2680 = vmatpush1.bf16.msra.mxu0 %v1729
  %2681 = vmatprep.subr.bf16.mxu0 %v1738
  %2682 = vmatpush1.bf16.msra.mxu0 %v1737
  %2683 = vmatprep.subr.bf16.mxu0 %v1746
  %2684 = vmatpush1.bf16.msra.mxu0 %v1745
  %2685 = vmatprep.subr.bf16.mxu0 %v1754
  %2686 = vmatpush1.bf16.msra.mxu0 %v1753
  %2687 = vmatprep.mubr.bf16.mxu0 %v466
  %2688 = vmatmul.mubr.bf16.gmra.mrb[0].mxu0 %v465
  %v2689 = vpop.f32.mrb[0].mxu0
  %v2690 = vadd.f32 0.0, %v2689
  %v2691 = vpop.f32.mrb[0].mxu0
  %v2692 = vadd.f32 0.0, %v2691
  %v2693 = vpop.f32.mrb[0].mxu0
  %v2694 = vadd.f32 0.0, %v2693
  %v2695 = vpop.f32.mrb[0].mxu0
  %v2696 = vadd.f32 0.0, %v2695
  %2697 = vdwg.mxu0
  %2698 = vmatprep.subr.bf16.mxu0 %v1762
  %2699 = vmatpush1.bf16.msra.mxu0 %v1761
  %2700 = vmatprep.subr.bf16.mxu0 %v1770
  %2701 = vmatpush1.bf16.msra.mxu0 %v1769
  %2702 = vmatprep.subr.bf16.mxu0 %v1778
  %2703 = vmatpush1.bf16.msra.mxu0 %v1777
  %2704 = vmatprep.subr.bf16.mxu0 %v1786
  %2705 = vmatpush1.bf16.msra.mxu0 %v1785
  %2706 = vmatprep.subr.bf16.mxu0 %v1794
  %2707 = vmatpush1.bf16.msra.mxu0 %v1793
  %2708 = vmatprep.subr.bf16.mxu0 %v1802
  %2709 = vmatpush1.bf16.msra.mxu0 %v1801
  %2710 = vmatprep.subr.bf16.mxu0 %v1810
  %2711 = vmatpush1.bf16.msra.mxu0 %v1809
  %2712 = vmatprep.subr.bf16.mxu0 %v1818
  %2713 = vmatpush1.bf16.msra.mxu0 %v1817
  %2714 = vmatprep.subr.bf16.mxu0 %v1826
  %2715 = vmatpush1.bf16.msra.mxu0 %v1825
  %2716 = vmatprep.subr.bf16.mxu0 %v1834
  %2717 = vmatpush1.bf16.msra.mxu0 %v1833
  %2718 = vmatprep.subr.bf16.mxu0 %v1842
  %2719 = vmatpush1.bf16.msra.mxu0 %v1841
  %2720 = vmatprep.subr.bf16.mxu0 %v1850
  %2721 = vmatpush1.bf16.msra.mxu0 %v1849
  %2722 = vmatprep.subr.bf16.mxu0 %v1858
  %2723 = vmatpush1.bf16.msra.mxu0 %v1857
  %2724 = vmatprep.subr.bf16.mxu0 %v1866
  %2725 = vmatpush1.bf16.msra.mxu0 %v1865
  %2726 = vmatprep.subr.bf16.mxu0 %v1874
  %2727 = vmatpush1.bf16.msra.mxu0 %v1873
  %2728 = vmatprep.subr.bf16.mxu0 %v1882
  %2729 = vmatpush1.bf16.msra.mxu0 %v1881
  %2730 = vmatprep.mubr.bf16.mxu0 %v468
  %2731 = vmatmul.mubr.bf16.gmra.mrb[0].mxu0 %v467
  %v2732 = vpop.f32.mrb[0].mxu0
  %v2733 = vadd.f32 %v2690, %v2732
  %v2734 = vpop.f32.mrb[0].mxu0
  %v2735 = vadd.f32 %v2692, %v2734
  %v2736 = vpop.f32.mrb[0].mxu0
  %v2737 = vadd.f32 %v2694, %v2736
  %v2738 = vpop.f32.mrb[0].mxu0
  %v2739 = vadd.f32 %v2696, %v2738
  %2740 = vdwg.mxu0
  %2741 = vmatprep.subr.bf16.mxu0 %v1890
  %2742 = vmatpush1.bf16.msra.mxu0 %v1889
  %2743 = vmatprep.subr.bf16.mxu0 %v1898
  %2744 = vmatpush1.bf16.msra.mxu0 %v1897
  %2745 = vmatprep.subr.bf16.mxu0 %v1906
  %2746 = vmatpush1.bf16.msra.mxu0 %v1905
  %2747 = vmatprep.subr.bf16.mxu0 %v1914
  %2748 = vmatpush1.bf16.msra.mxu0 %v1913
  %2749 = vmatprep.subr.bf16.mxu0 %v1922
  %2750 = vmatpush1.bf16.msra.mxu0 %v1921
  %2751 = vmatprep.subr.bf16.mxu0 %v1930
  %2752 = vmatpush1.bf16.msra.mxu0 %v1929
  %2753 = vmatprep.subr.bf16.mxu0 %v1938
  %2754 = vmatpush1.bf16.msra.mxu0 %v1937
  %2755 = vmatprep.subr.bf16.mxu0 %v1946
  %2756 = vmatpush1.bf16.msra.mxu0 %v1945
  %2757 = vmatprep.subr.bf16.mxu0 %v1954
  %2758 = vmatpush1.bf16.msra.mxu0 %v1953
  %2759 = vmatprep.subr.bf16.mxu0 %v1962
  %2760 = vmatpush1.bf16.msra.mxu0 %v1961
  %2761 = vmatprep.subr.bf16.mxu0 %v1970
  %2762 = vmatpush1.bf16.msra.mxu0 %v1969
  %2763 = vmatprep.subr.bf16.mxu0 %v1978
  %2764 = vmatpush1.bf16.msra.mxu0 %v1977
  %2765 = vmatprep.subr.bf16.mxu0 %v1986
  %2766 = vmatpush1.bf16.msra.mxu0 %v1985
  %2767 = vmatprep.subr.bf16.mxu0 %v1994
  %2768 = vmatpush1.bf16.msra.mxu0 %v1993
  %2769 = vmatprep.subr.bf16.mxu0 %v2002
  %2770 = vmatpush1.bf16.msra.mxu0 %v2001
  %2771 = vmatprep.subr.bf16.mxu0 %v2010
  %2772 = vmatpush1.bf16.msra.mxu0 %v2009
  %2773 = vmatprep.mubr.bf16.mxu0 %v470
  %2774 = vmatmul.mubr.bf16.gmra.mrb[0].mxu0 %v469
  %v2775 = vpop.f32.mrb[0].mxu0
  %v2776 = vadd.f32 %v2733, %v2775
  %v2777 = vpop.f32.mrb[0].mxu0
  %v2778 = vadd.f32 %v2735, %v2777
  %v2779 = vpop.f32.mrb[0].mxu0
  %v2780 = vadd.f32 %v2737, %v2779
  %v2781 = vpop.f32.mrb[0].mxu0
  %v2782 = vadd.f32 %v2739, %v2781
  %2783 = vdwg.mxu0
  %2784 = vmatprep.subr.bf16.mxu0 %v1636
  %2785 = vmatpush1.bf16.msra.mxu0 %v1635
  %2786 = vmatprep.subr.bf16.mxu0 %v1644
  %2787 = vmatpush1.bf16.msra.mxu0 %v1643
  %2788 = vmatprep.subr.bf16.mxu0 %v1652
  %2789 = vmatpush1.bf16.msra.mxu0 %v1651
  %2790 = vmatprep.subr.bf16.mxu0 %v1660
  %2791 = vmatpush1.bf16.msra.mxu0 %v1659
  %2792 = vmatprep.subr.bf16.mxu0 %v1668
  %2793 = vmatpush1.bf16.msra.mxu0 %v1667
  %2794 = vmatprep.subr.bf16.mxu0 %v1676
  %2795 = vmatpush1.bf16.msra.mxu0 %v1675
  %2796 = vmatprep.subr.bf16.mxu0 %v1684
  %2797 = vmatpush1.bf16.msra.mxu0 %v1683
  %2798 = vmatprep.subr.bf16.mxu0 %v1692
  %2799 = vmatpush1.bf16.msra.mxu0 %v1691
  %2800 = vmatprep.subr.bf16.mxu0 %v1700
  %2801 = vmatpush1.bf16.msra.mxu0 %v1699
  %2802 = vmatprep.subr.bf16.mxu0 %v1708
  %2803 = vmatpush1.bf16.msra.mxu0 %v1707
  %2804 = vmatprep.subr.bf16.mxu0 %v1716
  %2805 = vmatpush1.bf16.msra.mxu0 %v1715
  %2806 = vmatprep.subr.bf16.mxu0 %v1724
  %2807 = vmatpush1.bf16.msra.mxu0 %v1723
  %2808 = vmatprep.subr.bf16.mxu0 %v1732
  %2809 = vmatpush1.bf16.msra.mxu0 %v1731
  %2810 = vmatprep.subr.bf16.mxu0 %v1740
  %2811 = vmatpush1.bf16.msra.mxu0 %v1739
  %2812 = vmatprep.subr.bf16.mxu0 %v1748
  %2813 = vmatpush1.bf16.msra.mxu0 %v1747
  %2814 = vmatprep.subr.bf16.mxu0 %v1756
  %2815 = vmatpush1.bf16.msra.mxu0 %v1755
  %2816 = vmatprep.mubr.bf16.mxu0 %v466
  %2817 = vmatmul.mubr.bf16.gmra.mrb[0].mxu0 %v465
  %v2818 = vpop.f32.mrb[0].mxu0
  %v2819 = vadd.f32 0.0, %v2818
  %v2820 = vpop.f32.mrb[0].mxu0
  %v2821 = vadd.f32 0.0, %v2820
  %v2822 = vpop.f32.mrb[0].mxu0
  %v2823 = vadd.f32 0.0, %v2822
  %v2824 = vpop.f32.mrb[0].mxu0
  %v2825 = vadd.f32 0.0, %v2824
  %2826 = vdwg.mxu0
  %2827 = vmatprep.subr.bf16.mxu0 %v1764
  %2828 = vmatpush1.bf16.msra.mxu0 %v1763
  %2829 = vmatprep.subr.bf16.mxu0 %v1772
  %2830 = vmatpush1.bf16.msra.mxu0 %v1771
  %2831 = vmatprep.subr.bf16.mxu0 %v1780
  %2832 = vmatpush1.bf16.msra.mxu0 %v1779
  %2833 = vmatprep.subr.bf16.mxu0 %v1788
  %2834 = vmatpush1.bf16.msra.mxu0 %v1787
  %2835 = vmatprep.subr.bf16.mxu0 %v1796
  %2836 = vmatpush1.bf16.msra.mxu0 %v1795
  %2837 = vmatprep.subr.bf16.mxu0 %v1804
  %2838 = vmatpush1.bf16.msra.mxu0 %v1803
  %2839 = vmatprep.subr.bf16.mxu0 %v1812
  %2840 = vmatpush1.bf16.msra.mxu0 %v1811
  %2841 = vmatprep.subr.bf16.mxu0 %v1820
  %2842 = vmatpush1.bf16.msra.mxu0 %v1819
  %2843 = vmatprep.subr.bf16.mxu0 %v1828
  %2844 = vmatpush1.bf16.msra.mxu0 %v1827
  %2845 = vmatprep.subr.bf16.mxu0 %v1836
  %2846 = vmatpush1.bf16.msra.mxu0 %v1835
  %2847 = vmatprep.subr.bf16.mxu0 %v1844
  %2848 = vmatpush1.bf16.msra.mxu0 %v1843
  %2849 = vmatprep.subr.bf16.mxu0 %v1852
  %2850 = vmatpush1.bf16.msra.mxu0 %v1851
  %2851 = vmatprep.subr.bf16.mxu0 %v1860
  %2852 = vmatpush1.bf16.msra.mxu0 %v1859
  %2853 = vmatprep.subr.bf16.mxu0 %v1868
  %2854 = vmatpush1.bf16.msra.mxu0 %v1867
  %2855 = vmatprep.subr.bf16.mxu0 %v1876
  %2856 = vmatpush1.bf16.msra.mxu0 %v1875
  %2857 = vmatprep.subr.bf16.mxu0 %v1884
  %2858 = vmatpush1.bf16.msra.mxu0 %v1883
  %2859 = vmatprep.mubr.bf16.mxu0 %v468
  %2860 = vmatmul.mubr.bf16.gmra.mrb[0].mxu0 %v467
  %v2861 = vpop.f32.mrb[0].mxu0
  %v2862 = vadd.f32 %v2819, %v2861
  %v2863 = vpop.f32.mrb[0].mxu0
  %v2864 = vadd.f32 %v2821, %v2863
  %v2865 = vpop.f32.mrb[0].mxu0
  %v2866 = vadd.f32 %v2823, %v2865
  %v2867 = vpop.f32.mrb[0].mxu0
  %v2868 = vadd.f32 %v2825, %v2867
  %2869 = vdwg.mxu0
  %2870 = vmatprep.subr.bf16.mxu0 %v1892
  %2871 = vmatpush1.bf16.msra.mxu0 %v1891
  %2872 = vmatprep.subr.bf16.mxu0 %v1900
  %2873 = vmatpush1.bf16.msra.mxu0 %v1899
  %2874 = vmatprep.subr.bf16.mxu0 %v1908
  %2875 = vmatpush1.bf16.msra.mxu0 %v1907
  %2876 = vmatprep.subr.bf16.mxu0 %v1916
  %2877 = vmatpush1.bf16.msra.mxu0 %v1915
  %2878 = vmatprep.subr.bf16.mxu0 %v1924
  %2879 = vmatpush1.bf16.msra.mxu0 %v1923
  %2880 = vmatprep.subr.bf16.mxu0 %v1932
  %2881 = vmatpush1.bf16.msra.mxu0 %v1931
  %2882 = vmatprep.subr.bf16.mxu0 %v1940
  %2883 = vmatpush1.bf16.msra.mxu0 %v1939
  %2884 = vmatprep.subr.bf16.mxu0 %v1948
  %2885 = vmatpush1.bf16.msra.mxu0 %v1947
  %2886 = vmatprep.subr.bf16.mxu0 %v1956
  %2887 = vmatpush1.bf16.msra.mxu0 %v1955
  %2888 = vmatprep.subr.bf16.mxu0 %v1964
  %2889 = vmatpush1.bf16.msra.mxu0 %v1963
  %2890 = vmatprep.subr.bf16.mxu0 %v1972
  %2891 = vmatpush1.bf16.msra.mxu0 %v1971
  %2892 = vmatprep.subr.bf16.mxu0 %v1980
  %2893 = vmatpush1.bf16.msra.mxu0 %v1979
  %2894 = vmatprep.subr.bf16.mxu0 %v1988
  %2895 = vmatpush1.bf16.msra.mxu0 %v1987
  %2896 = vmatprep.subr.bf16.mxu0 %v1996
  %2897 = vmatpush1.bf16.msra.mxu0 %v1995
  %2898 = vmatprep.subr.bf16.mxu0 %v2004
  %2899 = vmatpush1.bf16.msra.mxu0 %v2003
  %2900 = vmatprep.subr.bf16.mxu0 %v2012
  %2901 = vmatpush1.bf16.msra.mxu0 %v2011
  %2902 = vmatprep.mubr.bf16.mxu0 %v470
  %2903 = vmatmul.mubr.bf16.gmra.mrb[0].mxu0 %v469
  %v2904 = vpop.f32.mrb[0].mxu0
  %v2905 = vadd.f32 %v2862, %v2904
  %v2906 = vpop.f32.mrb[0].mxu0
  %v2907 = vadd.f32 %v2864, %v2906
  %v2908 = vpop.f32.mrb[0].mxu0
  %v2909 = vadd.f32 %v2866, %v2908
  %v2910 = vpop.f32.mrb[0].mxu0
  %v2911 = vadd.f32 %v2868, %v2910
  %2912 = vdwg.mxu0
  %v2913 = vadd.f32 %v41, %v2518
  %v2914 = vadd.f32 %v42, %v2520
  %v2915 = vadd.f32 %v43, %v2647
  %v2916 = vadd.f32 %v44, %v2649
  %v2917 = vadd.f32 %v45, %v2776
  %v2918 = vadd.f32 %v46, %v2778
  %v2919 = vadd.f32 %v47, %v2905
  %v2920 = vadd.f32 %v48, %v2907
  %v2921 = vadd.f32 %v49, %v2522
  %v2922 = vadd.f32 %v50, %v2524
  %v2923 = vadd.f32 %v51, %v2651
  %v2924 = vadd.f32 %v52, %v2653
  %v2925 = vadd.f32 %v53, %v2780
  %v2926 = vadd.f32 %v54, %v2782
  %v2927 = vadd.f32 %v55, %v2909
  %v2928 = vadd.f32 %v56, %v2911
  %2929 = vst [vmem:[#allocation2] sm:$0xff] %v2913
  %2930 = vst [vmem:[#allocation2 + $0x8] sm:$0xff] %v2914
  %2931 = vst [vmem:[#allocation2 + $0x10] sm:$0xff] %v2915
  %2932 = vst [vmem:[#allocation2 + $0x18] sm:$0xff] %v2916
  %2933 = vst [vmem:[#allocation2 + $0x20] sm:$0xff] %v2917
  %2934 = vst [vmem:[#allocation2 + $0x28] sm:$0xff] %v2918
  %2935 = vst [vmem:[#allocation2 + $0x30] sm:$0xff] %v2919
  %2936 = vst [vmem:[#allocation2 + $0x38] sm:$0xff] %v2920
  %2937 = vst [vmem:[#allocation2 + $0x40] sm:$0xff] %v2921
  %2938 = vst [vmem:[#allocation2 + $0x48] sm:$0xff] %v2922
  %2939 = vst [vmem:[#allocation2 + $0x50] sm:$0xff] %v2923
  %2940 = vst [vmem:[#allocation2 + $0x58] sm:$0xff] %v2924
  %2941 = vst [vmem:[#allocation2 + $0x60] sm:$0xff] %v2925
  %2942 = vst [vmem:[#allocation2 + $0x68] sm:$0xff] %v2926
  %2943 = vst [vmem:[#allocation2 + $0x70] sm:$0xff] %v2927
  %2944 = vst [vmem:[#allocation2 + $0x78] sm:$0xff] %v2928
  // Predicated region
  $region26: #{my_model_forward.1} parent=0 // pred_check
    %p2945 = pneg %p21
  $region27: #{my_model_forward.1} parent=0 // pred_check_branch
    %2947 = sbr.rel (%p2945) target = $region29
  $region28: #{my_model_forward.1} parent=0 // pred_region
    %v2948 = vld [vmem:[#allocation2] sm:$0xff]
    %v2949 = vld [vmem:[#allocation2 + $0x8] sm:$0xff]
    %v2950 = vld [vmem:[#allocation2 + $0x10] sm:$0xff]
    %v2951 = vld [vmem:[#allocation2 + $0x18] sm:$0xff]
    %v2952 = vld [vmem:[#allocation2 + $0x20] sm:$0xff]
    %v2953 = vld [vmem:[#allocation2 + $0x28] sm:$0xff]
    %v2954 = vld [vmem:[#allocation2 + $0x30] sm:$0xff]
    %v2955 = vld [vmem:[#allocation2 + $0x38] sm:$0xff]
    %v2956 = vld [vmem:[#allocation2 + $0x40] sm:$0xff]
    %v2957 = vld [vmem:[#allocation2 + $0x48] sm:$0xff]
    %v2958 = vld [vmem:[#allocation2 + $0x50] sm:$0xff]
    %v2959 = vld [vmem:[#allocation2 + $0x58] sm:$0xff]
    %v2960 = vld [vmem:[#allocation2 + $0x60] sm:$0xff]
    %v2961 = vld [vmem:[#allocation2 + $0x68] sm:$0xff]
    %v2962 = vld [vmem:[#allocation2 + $0x70] sm:$0xff]
    %v2963 = vld [vmem:[#allocation2 + $0x78] sm:$0xff]
    %v2964 = vld [vmem:[%s2] sm:$0xff]
    %v2966 = vlaneseq
    %v2967 = vshrl.u32 %v2966, 7
    %v2968 = vsub.s32 0, %v2967
    %v2969 = vrot.slane %v2964, %v2968
    %v2970 = vlaneseq
    %v2971 = vshrl.u32 %v2970, 7
    %v2972 = vsub.s32 1, %v2971
    %v2973 = vrot.slane %v2964, %v2972
    %v2974 = vlaneseq
    %v2975 = vshrl.u32 %v2974, 7
    %v2976 = vsub.s32 2, %v2975
    %v2977 = vrot.slane %v2964, %v2976
    %v2978 = vlaneseq
    %v2979 = vshrl.u32 %v2978, 7
    %v2980 = vsub.s32 3, %v2979
    %v2981 = vrot.slane %v2964, %v2980
    %v2982 = vlaneseq
    %v2983 = vshrl.u32 %v2982, 7
    %v2984 = vsub.s32 4, %v2983
    %v2985 = vrot.slane %v2964, %v2984
    %v2986 = vlaneseq
    %v2987 = vshrl.u32 %v2986, 7
    %v2988 = vsub.s32 5, %v2987
    %v2989 = vrot.slane %v2964, %v2988
    %v2990 = vlaneseq
    %v2991 = vshrl.u32 %v2990, 7
    %v2992 = vsub.s32 6, %v2991
    %v2993 = vrot.slane %v2964, %v2992
    %v2994 = vlaneseq
    %v2995 = vshrl.u32 %v2994, 7
    %v2996 = vsub.s32 7, %v2995
    %v2997 = vrot.slane %v2964, %v2996
    %v3006 = vadd.f32 %v2948, %v2969
    %v3007 = vadd.f32 %v2949, %v2973
    %v3008 = vadd.f32 %v2950, %v2977
    %v3009 = vadd.f32 %v2951, %v2981
    %v3010 = vadd.f32 %v2952, %v2985
    %v3011 = vadd.f32 %v2953, %v2989
    %v3012 = vadd.f32 %v2954, %v2993
    %v3013 = vadd.f32 %v2955, %v2997
    %v3014 = vadd.f32 %v2956, %v2969
    %v3015 = vadd.f32 %v2957, %v2973
    %v3016 = vadd.f32 %v2958, %v2977
    %v3017 = vadd.f32 %v2959, %v2981
    %v3018 = vadd.f32 %v2960, %v2985
    %v3019 = vadd.f32 %v2961, %v2989
    %v3020 = vadd.f32 %v2962, %v2993
    %v3021 = vadd.f32 %v2963, %v2997
    %v3022 = vpack.c.bf16 %v3014, %v3006
    %v3023 = vpack.c.bf16 %v3015, %v3007
    %v3024 = vpack.c.bf16 %v3016, %v3008
    %v3025 = vpack.c.bf16 %v3017, %v3009
    %v3026 = vpack.c.bf16 %v3018, %v3010
    %v3027 = vpack.c.bf16 %v3019, %v3011
    %v3028 = vpack.c.bf16 %v3020, %v3012
    %v3029 = vpack.c.bf16 %v3021, %v3013
    %v3030 = vld [vmem:[%s3] sm:$0xf]
    %v3031 = vld [vmem:[%s3 + $0x4] sm:$0xf]
    %v3032 = vld [vmem:[%s3 + $0x8] sm:$0xf]
    %v3033 = vld [vmem:[%s3 + $0xc] sm:$0xf]
    %v3034 = vld [vmem:[%s3 + $0x10] sm:$0xf]
    %v3035 = vld [vmem:[%s3 + $0x14] sm:$0xf]
    %v3036 = vld [vmem:[%s3 + $0x18] sm:$0xf]
    %v3037 = vld [vmem:[%s3 + $0x1c] sm:$0xf]
    %v3038 = vld [vmem:[%s3 + $0x20] sm:$0xf]
    %v3039 = vld [vmem:[%s3 + $0x24] sm:$0xf]
    %v3040 = vld [vmem:[%s3 + $0x28] sm:$0xf]
    %v3041 = vld [vmem:[%s3 + $0x2c] sm:$0xf]
    %v3042 = vld [vmem:[%s3 + $0x30] sm:$0xf]
    %v3043 = vld [vmem:[%s3 + $0x34] sm:$0xf]
    %v3044 = vld [vmem:[%s3 + $0x38] sm:$0xf]
    %v3045 = vld [vmem:[%s3 + $0x3c] sm:$0xf]
    %v3046 = vld [vmem:[%s3 + $0x40] sm:$0xf]
    %v3047 = vld [vmem:[%s3 + $0x44] sm:$0xf]
    %v3048 = vld [vmem:[%s3 + $0x48] sm:$0xf]
    %v3049 = vld [vmem:[%s3 + $0x4c] sm:$0xf]
    %v3050 = vld [vmem:[%s3 + $0x50] sm:$0xf]
    %v3051 = vld [vmem:[%s3 + $0x54] sm:$0xf]
    %v3052 = vld [vmem:[%s3 + $0x58] sm:$0xf]
    %v3053 = vld [vmem:[%s3 + $0x5c] sm:$0xf]
    %v3054 = vld [vmem:[%s3 + $0x60] sm:$0xf]
    %v3055 = vld [vmem:[%s3 + $0x64] sm:$0xf]
    %v3056 = vld [vmem:[%s3 + $0x68] sm:$0xf]
    %v3057 = vld [vmem:[%s3 + $0x6c] sm:$0xf]
    %v3058 = vld [vmem:[%s3 + $0x70] sm:$0xf]
    %v3059 = vld [vmem:[%s3 + $0x74] sm:$0xf]
    %v3060 = vld [vmem:[%s3 + $0x78] sm:$0xf]
    %v3061 = vld [vmem:[%s3 + $0x7c] sm:$0xf]
    %v3062 = vld [vmem:[%s3 + $0x80] sm:$0xf]
    %v3063 = vld [vmem:[%s3 + $0x84] sm:$0xf]
    %v3064 = vld [vmem:[%s3 + $0x88] sm:$0xf]
    %v3065 = vld [vmem:[%s3 + $0x8c] sm:$0xf]
    %v3066 = vld [vmem:[%s3 + $0x90] sm:$0xf]
    %v3067 = vld [vmem:[%s3 + $0x94] sm:$0xf]
    %v3068 = vld [vmem:[%s3 + $0x98] sm:$0xf]
    %v3069 = vld [vmem:[%s3 + $0x9c] sm:$0xf]
    %v3070 = vld [vmem:[%s3 + $0xa0] sm:$0xf]
    %v3071 = vld [vmem:[%s3 + $0xa4] sm:$0xf]
    %v3072 = vld [vmem:[%s3 + $0xa8] sm:$0xf]
    %v3073 = vld [vmem:[%s3 + $0xac] sm:$0xf]
    %v3074 = vld [vmem:[%s3 + $0xb0] sm:$0xf]
    %v3075 = vld [vmem:[%s3 + $0xb4] sm:$0xf]
    %v3076 = vld [vmem:[%s3 + $0xb8] sm:$0xf]
    %v3077 = vld [vmem:[%s3 + $0xbc] sm:$0xf]
    %v3078 = vld [vmem:[%s3 + $0xc0] sm:$0xf]
    %v3079 = vld [vmem:[%s3 + $0xc4] sm:$0xf]
    %v3080 = vld [vmem:[%s3 + $0xc8] sm:$0xf]
    %v3081 = vld [vmem:[%s3 + $0xcc] sm:$0xf]
    %v3082 = vld [vmem:[%s3 + $0xd0] sm:$0xf]
    %v3083 = vld [vmem:[%s3 + $0xd4] sm:$0xf]
    %v3084 = vld [vmem:[%s3 + $0xd8] sm:$0xf]
    %v3085 = vld [vmem:[%s3 + $0xdc] sm:$0xf]
    %v3086 = vld [vmem:[%s3 + $0xe0] sm:$0xf]
    %v3087 = vld [vmem:[%s3 + $0xe4] sm:$0xf]
    %v3088 = vld [vmem:[%s3 + $0xe8] sm:$0xf]
    %v3089 = vld [vmem:[%s3 + $0xec] sm:$0xf]
    %v3090 = vld [vmem:[%s3 + $0xf0] sm:$0xf]
    %v3091 = vld [vmem:[%s3 + $0xf4] sm:$0xf]
    %v3092 = vld [vmem:[%s3 + $0xf8] sm:$0xf]
    %v3093 = vld [vmem:[%s3 + $0xfc] sm:$0xf]
    %v3094 = vld [vmem:[%s3 + $0x100] sm:$0xf]
    %v3095 = vld [vmem:[%s3 + $0x104] sm:$0xf]
    %v3096 = vld [vmem:[%s3 + $0x108] sm:$0xf]
    %v3097 = vld [vmem:[%s3 + $0x10c] sm:$0xf]
    %v3098 = vld [vmem:[%s3 + $0x110] sm:$0xf]
    %v3099 = vld [vmem:[%s3 + $0x114] sm:$0xf]
    %v3100 = vld [vmem:[%s3 + $0x118] sm:$0xf]
    %v3101 = vld [vmem:[%s3 + $0x11c] sm:$0xf]
    %v3102 = vld [vmem:[%s3 + $0x120] sm:$0xf]
    %v3103 = vld [vmem:[%s3 + $0x124] sm:$0xf]
    %v3104 = vld [vmem:[%s3 + $0x128] sm:$0xf]
    %v3105 = vld [vmem:[%s3 + $0x12c] sm:$0xf]
    %v3106 = vld [vmem:[%s3 + $0x130] sm:$0xf]
    %v3107 = vld [vmem:[%s3 + $0x134] sm:$0xf]
    %v3108 = vld [vmem:[%s3 + $0x138] sm:$0xf]
    %v3109 = vld [vmem:[%s3 + $0x13c] sm:$0xf]
    %v3110 = vld [vmem:[%s3 + $0x140] sm:$0xf]
    %v3111 = vld [vmem:[%s3 + $0x144] sm:$0xf]
    %v3112 = vld [vmem:[%s3 + $0x148] sm:$0xf]
    %v3113 = vld [vmem:[%s3 + $0x14c] sm:$0xf]
    %v3114 = vld [vmem:[%s3 + $0x150] sm:$0xf]
    %v3115 = vld [vmem:[%s3 + $0x154] sm:$0xf]
    %v3116 = vld [vmem:[%s3 + $0x158] sm:$0xf]
    %v3117 = vld [vmem:[%s3 + $0x15c] sm:$0xf]
    %v3118 = vld [vmem:[%s3 + $0x160] sm:$0xf]
    %v3119 = vld [vmem:[%s3 + $0x164] sm:$0xf]
    %v3120 = vld [vmem:[%s3 + $0x168] sm:$0xf]
    %v3121 = vld [vmem:[%s3 + $0x16c] sm:$0xf]
    %v3122 = vld [vmem:[%s3 + $0x170] sm:$0xf]
    %v3123 = vld [vmem:[%s3 + $0x174] sm:$0xf]
    %v3124 = vld [vmem:[%s3 + $0x178] sm:$0xf]
    %v3125 = vld [vmem:[%s3 + $0x17c] sm:$0xf]
    %v3126 = vld [vmem:[%s3 + $0x180] sm:$0xf]
    %v3127 = vld [vmem:[%s3 + $0x184] sm:$0xf]
    %v3128 = vld [vmem:[%s3 + $0x188] sm:$0xf]
    %v3129 = vld [vmem:[%s3 + $0x18c] sm:$0xf]
    %v3130 = vld [vmem:[%s3 + $0x190] sm:$0xf]
    %v3131 = vld [vmem:[%s3 + $0x194] sm:$0xf]
    %v3132 = vld [vmem:[%s3 + $0x198] sm:$0xf]
    %v3133 = vld [vmem:[%s3 + $0x19c] sm:$0xf]
    %v3134 = vld [vmem:[%s3 + $0x1a0] sm:$0xf]
    %v3135 = vld [vmem:[%s3 + $0x1a4] sm:$0xf]
    %v3136 = vld [vmem:[%s3 + $0x1a8] sm:$0xf]
    %v3137 = vld [vmem:[%s3 + $0x1ac] sm:$0xf]
    %v3138 = vld [vmem:[%s3 + $0x1b0] sm:$0xf]
    %v3139 = vld [vmem:[%s3 + $0x1b4] sm:$0xf]
    %v3140 = vld [vmem:[%s3 + $0x1b8] sm:$0xf]
    %v3141 = vld [vmem:[%s3 + $0x1bc] sm:$0xf]
    %v3142 = vld [vmem:[%s3 + $0x1c0] sm:$0xf]
    %v3143 = vld [vmem:[%s3 + $0x1c4] sm:$0xf]
    %v3144 = vld [vmem:[%s3 + $0x1c8] sm:$0xf]
    %v3145 = vld [vmem:[%s3 + $0x1cc] sm:$0xf]
    %v3146 = vld [vmem:[%s3 + $0x1d0] sm:$0xf]
    %v3147 = vld [vmem:[%s3 + $0x1d4] sm:$0xf]
    %v3148 = vld [vmem:[%s3 + $0x1d8] sm:$0xf]
    %v3149 = vld [vmem:[%s3 + $0x1dc] sm:$0xf]
    %v3150 = vld [vmem:[%s3 + $0x1e0] sm:$0xf]
    %v3151 = vld [vmem:[%s3 + $0x1e4] sm:$0xf]
    %v3152 = vld [vmem:[%s3 + $0x1e8] sm:$0xf]
    %v3153 = vld [vmem:[%s3 + $0x1ec] sm:$0xf]
    %v3154 = vld [vmem:[%s3 + $0x1f0] sm:$0xf]
    %v3155 = vld [vmem:[%s3 + $0x1f4] sm:$0xf]
    %v3156 = vld [vmem:[%s3 + $0x1f8] sm:$0xf]
    %v3157 = vld [vmem:[%s3 + $0x1fc] sm:$0xf]
    %v3158 = vld [vmem:[%s4] sm:$0x1]
    %v3160 = vlaneseq
    %v3161 = vshrl.u32 %v3160, 7
    %v3162 = vsub.s32 0, %v3161
    %v3163 = vrot.slane %v3158, %v3162
    %v3293 = vunpack.c.l.b16 %v3030
    %v3294 = vunpack.c.l.b16 %v3031
    %v3295 = vunpack.c.l.b16 %v3032
    %v3296 = vunpack.c.l.b16 %v3033
    %v3297 = vunpack.c.l.b16 %v3034
    %v3298 = vunpack.c.l.b16 %v3035
    %v3299 = vunpack.c.l.b16 %v3036
    %v3300 = vunpack.c.l.b16 %v3037
    %v3301 = vunpack.c.l.b16 %v3038
    %v3302 = vunpack.c.l.b16 %v3039
    %v3303 = vunpack.c.l.b16 %v3040
    %v3304 = vunpack.c.l.b16 %v3041
    %v3305 = vunpack.c.l.b16 %v3042
    %v3306 = vunpack.c.l.b16 %v3043
    %v3307 = vunpack.c.l.b16 %v3044
    %v3308 = vunpack.c.l.b16 %v3045
    %v3309 = vunpack.c.l.b16 %v3046
    %v3310 = vunpack.c.l.b16 %v3047
    %v3311 = vunpack.c.l.b16 %v3048
    %v3312 = vunpack.c.l.b16 %v3049
    %v3313 = vunpack.c.l.b16 %v3050
    %v3314 = vunpack.c.l.b16 %v3051
    %v3315 = vunpack.c.l.b16 %v3052
    %v3316 = vunpack.c.l.b16 %v3053
    %v3317 = vunpack.c.l.b16 %v3054
    %v3318 = vunpack.c.l.b16 %v3055
    %v3319 = vunpack.c.l.b16 %v3056
    %v3320 = vunpack.c.l.b16 %v3057
    %v3321 = vunpack.c.l.b16 %v3058
    %v3322 = vunpack.c.l.b16 %v3059
    %v3323 = vunpack.c.l.b16 %v3060
    %v3324 = vunpack.c.l.b16 %v3061
    %v3325 = vunpack.c.l.b16 %v3062
    %v3326 = vunpack.c.l.b16 %v3063
    %v3327 = vunpack.c.l.b16 %v3064
    %v3328 = vunpack.c.l.b16 %v3065
    %v3329 = vunpack.c.l.b16 %v3066
    %v3330 = vunpack.c.l.b16 %v3067
    %v3331 = vunpack.c.l.b16 %v3068
    %v3332 = vunpack.c.l.b16 %v3069
    %v3333 = vunpack.c.l.b16 %v3070
    %v3334 = vunpack.c.l.b16 %v3071
    %v3335 = vunpack.c.l.b16 %v3072
    %v3336 = vunpack.c.l.b16 %v3073
    %v3337 = vunpack.c.l.b16 %v3074
    %v3338 = vunpack.c.l.b16 %v3075
    %v3339 = vunpack.c.l.b16 %v3076
    %v3340 = vunpack.c.l.b16 %v3077
    %v3341 = vunpack.c.l.b16 %v3078
    %v3342 = vunpack.c.l.b16 %v3079
    %v3343 = vunpack.c.l.b16 %v3080
    %v3344 = vunpack.c.l.b16 %v3081
    %v3345 = vunpack.c.l.b16 %v3082
    %v3346 = vunpack.c.l.b16 %v3083
    %v3347 = vunpack.c.l.b16 %v3084
    %v3348 = vunpack.c.l.b16 %v3085
    %v3349 = vunpack.c.l.b16 %v3086
    %v3350 = vunpack.c.l.b16 %v3087
    %v3351 = vunpack.c.l.b16 %v3088
    %v3352 = vunpack.c.l.b16 %v3089
    %v3353 = vunpack.c.l.b16 %v3090
    %v3354 = vunpack.c.l.b16 %v3091
    %v3355 = vunpack.c.l.b16 %v3092
    %v3356 = vunpack.c.l.b16 %v3093
    %v3357 = vunpack.c.l.b16 %v3094
    %v3358 = vunpack.c.l.b16 %v3095
    %v3359 = vunpack.c.l.b16 %v3096
    %v3360 = vunpack.c.l.b16 %v3097
    %v3361 = vunpack.c.l.b16 %v3098
    %v3362 = vunpack.c.l.b16 %v3099
    %v3363 = vunpack.c.l.b16 %v3100
    %v3364 = vunpack.c.l.b16 %v3101
    %v3365 = vunpack.c.l.b16 %v3102
    %v3366 = vunpack.c.l.b16 %v3103
    %v3367 = vunpack.c.l.b16 %v3104
    %v3368 = vunpack.c.l.b16 %v3105
    %v3369 = vunpack.c.l.b16 %v3106
    %v3370 = vunpack.c.l.b16 %v3107
    %v3371 = vunpack.c.l.b16 %v3108
    %v3372 = vunpack.c.l.b16 %v3109
    %v3373 = vunpack.c.l.b16 %v3110
    %v3374 = vunpack.c.l.b16 %v3111
    %v3375 = vunpack.c.l.b16 %v3112
    %v3376 = vunpack.c.l.b16 %v3113
    %v3377 = vunpack.c.l.b16 %v3114
    %v3378 = vunpack.c.l.b16 %v3115
    %v3379 = vunpack.c.l.b16 %v3116
    %v3380 = vunpack.c.l.b16 %v3117
    %v3381 = vunpack.c.l.b16 %v3118
    %v3382 = vunpack.c.l.b16 %v3119
    %v3383 = vunpack.c.l.b16 %v3120
    %v3384 = vunpack.c.l.b16 %v3121
    %v3385 = vunpack.c.l.b16 %v3122
    %v3386 = vunpack.c.l.b16 %v3123
    %v3387 = vunpack.c.l.b16 %v3124
    %v3388 = vunpack.c.l.b16 %v3125
    %v3389 = vunpack.c.l.b16 %v3126
    %v3390 = vunpack.c.l.b16 %v3127
    %v3391 = vunpack.c.l.b16 %v3128
    %v3392 = vunpack.c.l.b16 %v3129
    %v3393 = vunpack.c.l.b16 %v3130
    %v3394 = vunpack.c.l.b16 %v3131
    %v3395 = vunpack.c.l.b16 %v3132
    %v3396 = vunpack.c.l.b16 %v3133
    %v3397 = vunpack.c.l.b16 %v3134
    %v3398 = vunpack.c.l.b16 %v3135
    %v3399 = vunpack.c.l.b16 %v3136
    %v3400 = vunpack.c.l.b16 %v3137
    %v3401 = vunpack.c.l.b16 %v3138
    %v3402 = vunpack.c.l.b16 %v3139
    %v3403 = vunpack.c.l.b16 %v3140
    %v3404 = vunpack.c.l.b16 %v3141
    %v3405 = vunpack.c.l.b16 %v3142
    %v3406 = vunpack.c.l.b16 %v3143
    %v3407 = vunpack.c.l.b16 %v3144
    %v3408 = vunpack.c.l.b16 %v3145
    %v3409 = vunpack.c.l.b16 %v3146
    %v3410 = vunpack.c.l.b16 %v3147
    %v3411 = vunpack.c.l.b16 %v3148
    %v3412 = vunpack.c.l.b16 %v3149
    %v3413 = vunpack.c.l.b16 %v3150
    %v3414 = vunpack.c.l.b16 %v3151
    %v3415 = vunpack.c.l.b16 %v3152
    %v3416 = vunpack.c.l.b16 %v3153
    %v3417 = vunpack.c.l.b16 %v3154
    %v3418 = vunpack.c.l.b16 %v3155
    %v3419 = vunpack.c.l.b16 %v3156
    %v3420 = vunpack.c.l.b16 %v3157
    %v3421 = vpack.c.b16 %v3294, %v3293
    %v3422 = vpack.c.b16 %v3296, %v3295
    %v3423 = vpack.c.b16 %v3298, %v3297
    %v3424 = vpack.c.b16 %v3300, %v3299
    %v3425 = vpack.c.b16 %v3302, %v3301
    %v3426 = vpack.c.b16 %v3304, %v3303
    %v3427 = vpack.c.b16 %v3306, %v3305
    %v3428 = vpack.c.b16 %v3308, %v3307
    %v3429 = vpack.c.b16 %v3310, %v3309
    %v3430 = vpack.c.b16 %v3312, %v3311
    %v3431 = vpack.c.b16 %v3314, %v3313
    %v3432 = vpack.c.b16 %v3316, %v3315
    %v3433 = vpack.c.b16 %v3318, %v3317
    %v3434 = vpack.c.b16 %v3320, %v3319
    %v3435 = vpack.c.b16 %v3322, %v3321
    %v3436 = vpack.c.b16 %v3324, %v3323
    %v3437 = vpack.c.b16 %v3326, %v3325
    %v3438 = vpack.c.b16 %v3328, %v3327
    %v3439 = vpack.c.b16 %v3330, %v3329
    %v3440 = vpack.c.b16 %v3332, %v3331
    %v3441 = vpack.c.b16 %v3334, %v3333
    %v3442 = vpack.c.b16 %v3336, %v3335
    %v3443 = vpack.c.b16 %v3338, %v3337
    %v3444 = vpack.c.b16 %v3340, %v3339
    %v3445 = vpack.c.b16 %v3342, %v3341
    %v3446 = vpack.c.b16 %v3344, %v3343
    %v3447 = vpack.c.b16 %v3346, %v3345
    %v3448 = vpack.c.b16 %v3348, %v3347
    %v3449 = vpack.c.b16 %v3350, %v3349
    %v3450 = vpack.c.b16 %v3352, %v3351
    %v3451 = vpack.c.b16 %v3354, %v3353
    %v3452 = vpack.c.b16 %v3356, %v3355
    %v3453 = vpack.c.b16 %v3358, %v3357
    %v3454 = vpack.c.b16 %v3360, %v3359
    %v3455 = vpack.c.b16 %v3362, %v3361
    %v3456 = vpack.c.b16 %v3364, %v3363
    %v3457 = vpack.c.b16 %v3366, %v3365
    %v3458 = vpack.c.b16 %v3368, %v3367
    %v3459 = vpack.c.b16 %v3370, %v3369
    %v3460 = vpack.c.b16 %v3372, %v3371
    %v3461 = vpack.c.b16 %v3374, %v3373
    %v3462 = vpack.c.b16 %v3376, %v3375
    %v3463 = vpack.c.b16 %v3378, %v3377
    %v3464 = vpack.c.b16 %v3380, %v3379
    %v3465 = vpack.c.b16 %v3382, %v3381
    %v3466 = vpack.c.b16 %v3384, %v3383
    %v3467 = vpack.c.b16 %v3386, %v3385
    %v3468 = vpack.c.b16 %v3388, %v3387
    %v3469 = vpack.c.b16 %v3390, %v3389
    %v3470 = vpack.c.b16 %v3392, %v3391
    %v3471 = vpack.c.b16 %v3394, %v3393
    %v3472 = vpack.c.b16 %v3396, %v3395
    %v3473 = vpack.c.b16 %v3398, %v3397
    %v3474 = vpack.c.b16 %v3400, %v3399
    %v3475 = vpack.c.b16 %v3402, %v3401
    %v3476 = vpack.c.b16 %v3404, %v3403
    %v3477 = vpack.c.b16 %v3406, %v3405
    %v3478 = vpack.c.b16 %v3408, %v3407
    %v3479 = vpack.c.b16 %v3410, %v3409
    %v3480 = vpack.c.b16 %v3412, %v3411
    %v3481 = vpack.c.b16 %v3414, %v3413
    %v3482 = vpack.c.b16 %v3416, %v3415
    %v3483 = vpack.c.b16 %v3418, %v3417
    %v3484 = vpack.c.b16 %v3420, %v3419
    %3549 = vmatprep.subr.bf16.mxu0 0
    %3550 = vmatpush1.bf16.msra.mxu0 %v3421
    %3551 = vmatprep.subr.bf16.mxu0 0
    %3552 = vmatpush1.bf16.msra.mxu0 %v3422
    %3553 = vmatprep.subr.bf16.mxu0 0
    %3554 = vmatpush1.bf16.msra.mxu0 %v3423
    %3555 = vmatprep.subr.bf16.mxu0 0
    %3556 = vmatpush1.bf16.msra.mxu0 %v3424
    %3557 = vmatprep.subr.bf16.mxu0 0
    %3558 = vmatpush1.bf16.msra.mxu0 %v3425
    %3559 = vmatprep.subr.bf16.mxu0 0
    %3560 = vmatpush1.bf16.msra.mxu0 %v3426
    %3561 = vmatprep.subr.bf16.mxu0 0
    %3562 = vmatpush1.bf16.msra.mxu0 %v3427
    %3563 = vmatprep.subr.bf16.mxu0 0
    %3564 = vmatpush1.bf16.msra.mxu0 %v3428
    %3565 = vmatprep.subr.bf16.mxu0 0
    %3566 = vmatpush1.bf16.msra.mxu0 %v3429
    %3567 = vmatprep.subr.bf16.mxu0 0
    %3568 = vmatpush1.bf16.msra.mxu0 %v3430
    %3569 = vmatprep.subr.bf16.mxu0 0
    %3570 = vmatpush1.bf16.msra.mxu0 %v3431
    %3571 = vmatprep.subr.bf16.mxu0 0
    %3572 = vmatpush1.bf16.msra.mxu0 %v3432
    %3573 = vmatprep.subr.bf16.mxu0 0
    %3574 = vmatpush1.bf16.msra.mxu0 %v3433
    %3575 = vmatprep.subr.bf16.mxu0 0
    %3576 = vmatpush1.bf16.msra.mxu0 %v3434
    %3577 = vmatprep.subr.bf16.mxu0 0
    %3578 = vmatpush1.bf16.msra.mxu0 %v3435
    %3579 = vmatprep.subr.bf16.mxu0 0
    %3580 = vmatpush1.bf16.msra.mxu0 %v3436
    %3581 = vmatprep.mubr.bf16.mxu0 %v3023
    %3582 = vmatmul.mubr.bf16.gmra.mrb[0].mxu0 %v3022
    %v3583 = vpop.f32.mrb[0].mxu0
    %v3584 = vadd.f32 %v3163, %v3583
    %v3585 = vpop.f32.mrb[0].mxu0
    %v3586 = vpop.f32.mrb[0].mxu0
    %v3587 = vadd.f32 %v3163, %v3586
    %v3588 = vpop.f32.mrb[0].mxu0
    %3589 = vdwg.mxu0
    %3590 = vmatprep.subr.bf16.mxu0 0
    %3591 = vmatpush1.bf16.msra.mxu0 %v3437
    %3592 = vmatprep.subr.bf16.mxu0 0
    %3593 = vmatpush1.bf16.msra.mxu0 %v3438
    %3594 = vmatprep.subr.bf16.mxu0 0
    %3595 = vmatpush1.bf16.msra.mxu0 %v3439
    %3596 = vmatprep.subr.bf16.mxu0 0
    %3597 = vmatpush1.bf16.msra.mxu0 %v3440
    %3598 = vmatprep.subr.bf16.mxu0 0
    %3599 = vmatpush1.bf16.msra.mxu0 %v3441
    %3600 = vmatprep.subr.bf16.mxu0 0
    %3601 = vmatpush1.bf16.msra.mxu0 %v3442
    %3602 = vmatprep.subr.bf16.mxu0 0
    %3603 = vmatpush1.bf16.msra.mxu0 %v3443
    %3604 = vmatprep.subr.bf16.mxu0 0
    %3605 = vmatpush1.bf16.msra.mxu0 %v3444
    %3606 = vmatprep.subr.bf16.mxu0 0
    %3607 = vmatpush1.bf16.msra.mxu0 %v3445
    %3608 = vmatprep.subr.bf16.mxu0 0
    %3609 = vmatpush1.bf16.msra.mxu0 %v3446
    %3610 = vmatprep.subr.bf16.mxu0 0
    %3611 = vmatpush1.bf16.msra.mxu0 %v3447
    %3612 = vmatprep.subr.bf16.mxu0 0
    %3613 = vmatpush1.bf16.msra.mxu0 %v3448
    %3614 = vmatprep.subr.bf16.mxu0 0
    %3615 = vmatpush1.bf16.msra.mxu0 %v3449
    %3616 = vmatprep.subr.bf16.mxu0 0
    %3617 = vmatpush1.bf16.msra.mxu0 %v3450
    %3618 = vmatprep.subr.bf16.mxu0 0
    %3619 = vmatpush1.bf16.msra.mxu0 %v3451
    %3620 = vmatprep.subr.bf16.mxu0 0
    %3621 = vmatpush1.bf16.msra.mxu0 %v3452
    %3622 = vmatprep.mubr.bf16.mxu0 %v3025
    %3623 = vmatmul.mubr.bf16.gmra.mrb[0].mxu0 %v3024
    %v3624 = vpop.f32.mrb[0].mxu0
    %v3625 = vadd.f32 %v3584, %v3624
    %v3626 = vpop.f32.mrb[0].mxu0
    %v3627 = vpop.f32.mrb[0].mxu0
    %v3628 = vadd.f32 %v3587, %v3627
    %v3629 = vpop.f32.mrb[0].mxu0
    %3630 = vdwg.mxu0
    %3631 = vmatprep.subr.bf16.mxu0 0
    %3632 = vmatpush1.bf16.msra.mxu0 %v3453
    %3633 = vmatprep.subr.bf16.mxu0 0
    %3634 = vmatpush1.bf16.msra.mxu0 %v3454
    %3635 = vmatprep.subr.bf16.mxu0 0
    %3636 = vmatpush1.bf16.msra.mxu0 %v3455
    %3637 = vmatprep.subr.bf16.mxu0 0
    %3638 = vmatpush1.bf16.msra.mxu0 %v3456
    %3639 = vmatprep.subr.bf16.mxu0 0
    %3640 = vmatpush1.bf16.msra.mxu0 %v3457
    %3641 = vmatprep.subr.bf16.mxu0 0
    %3642 = vmatpush1.bf16.msra.mxu0 %v3458
    %3643 = vmatprep.subr.bf16.mxu0 0
    %3644 = vmatpush1.bf16.msra.mxu0 %v3459
    %3645 = vmatprep.subr.bf16.mxu0 0
    %3646 = vmatpush1.bf16.msra.mxu0 %v3460
    %3647 = vmatprep.subr.bf16.mxu0 0
    %3648 = vmatpush1.bf16.msra.mxu0 %v3461
    %3649 = vmatprep.subr.bf16.mxu0 0
    %3650 = vmatpush1.bf16.msra.mxu0 %v3462
    %3651 = vmatprep.subr.bf16.mxu0 0
    %3652 = vmatpush1.bf16.msra.mxu0 %v3463
    %3653 = vmatprep.subr.bf16.mxu0 0
    %3654 = vmatpush1.bf16.msra.mxu0 %v3464
    %3655 = vmatprep.subr.bf16.mxu0 0
    %3656 = vmatpush1.bf16.msra.mxu0 %v3465
    %3657 = vmatprep.subr.bf16.mxu0 0
    %3658 = vmatpush1.bf16.msra.mxu0 %v3466
    %3659 = vmatprep.subr.bf16.mxu0 0
    %3660 = vmatpush1.bf16.msra.mxu0 %v3467
    %3661 = vmatprep.subr.bf16.mxu0 0
    %3662 = vmatpush1.bf16.msra.mxu0 %v3468
    %3663 = vmatprep.mubr.bf16.mxu0 %v3027
    %3664 = vmatmul.mubr.bf16.gmra.mrb[0].mxu0 %v3026
    %v3665 = vpop.f32.mrb[0].mxu0
    %v3666 = vadd.f32 %v3625, %v3665
    %v3667 = vpop.f32.mrb[0].mxu0
    %v3668 = vpop.f32.mrb[0].mxu0
    %v3669 = vadd.f32 %v3628, %v3668
    %v3670 = vpop.f32.mrb[0].mxu0
    %3671 = vdwg.mxu0
    %3672 = vmatprep.subr.bf16.mxu0 0
    %3673 = vmatpush1.bf16.msra.mxu0 %v3469
    %3674 = vmatprep.subr.bf16.mxu0 0
    %3675 = vmatpush1.bf16.msra.mxu0 %v3470
    %3676 = vmatprep.subr.bf16.mxu0 0
    %3677 = vmatpush1.bf16.msra.mxu0 %v3471
    %3678 = vmatprep.subr.bf16.mxu0 0
    %3679 = vmatpush1.bf16.msra.mxu0 %v3472
    %3680 = vmatprep.subr.bf16.mxu0 0
    %3681 = vmatpush1.bf16.msra.mxu0 %v3473
    %3682 = vmatprep.subr.bf16.mxu0 0
    %3683 = vmatpush1.bf16.msra.mxu0 %v3474
    %3684 = vmatprep.subr.bf16.mxu0 0
    %3685 = vmatpush1.bf16.msra.mxu0 %v3475
    %3686 = vmatprep.subr.bf16.mxu0 0
    %3687 = vmatpush1.bf16.msra.mxu0 %v3476
    %3688 = vmatprep.subr.bf16.mxu0 0
    %3689 = vmatpush1.bf16.msra.mxu0 %v3477
    %3690 = vmatprep.subr.bf16.mxu0 0
    %3691 = vmatpush1.bf16.msra.mxu0 %v3478
    %3692 = vmatprep.subr.bf16.mxu0 0
    %3693 = vmatpush1.bf16.msra.mxu0 %v3479
    %3694 = vmatprep.subr.bf16.mxu0 0
    %3695 = vmatpush1.bf16.msra.mxu0 %v3480
    %3696 = vmatprep.subr.bf16.mxu0 0
    %3697 = vmatpush1.bf16.msra.mxu0 %v3481
    %3698 = vmatprep.subr.bf16.mxu0 0
    %3699 = vmatpush1.bf16.msra.mxu0 %v3482
    %3700 = vmatprep.subr.bf16.mxu0 0
    %3701 = vmatpush1.bf16.msra.mxu0 %v3483
    %3702 = vmatprep.subr.bf16.mxu0 0
    %3703 = vmatpush1.bf16.msra.mxu0 %v3484
    %3704 = vmatprep.mubr.bf16.mxu0 %v3029
    %3705 = vmatmul.mubr.bf16.gmra.mrb[0].mxu0 %v3028
    %v3706 = vpop.f32.mrb[0].mxu0
    %v3707 = vadd.f32 %v3666, %v3706
    %v3708 = vpop.f32.mrb[0].mxu0
    %v3709 = vpop.f32.mrb[0].mxu0
    %v3710 = vadd.f32 %v3669, %v3709
    %v3711 = vpop.f32.mrb[0].mxu0
    %3712 = vdwg.mxu0
    %3713 = vst [vmem:[%s5] sm:$0xff] %v3707
    %3714 = vst [vmem:[%s5 + $0x8] sm:$0xff] %v3710
  $region29: #{my_model_forward.1} parent=0 // pred_fallthru
    _
  // Predicated region
  $region30: #{my_model_forward.1} parent=0 // pred_check
    _
  $region31: #{my_model_forward.1} parent=0 // pred_check_branch
    %3716 = sbr.rel (0) target = $region33
  $region32: #{my_model_forward.1} parent=0 // pred_region
    _
  $region33: #{my_model_forward.1} parent=0 // pred_fallthru
    _
  // Predicated region
  $region34: #{my_model_forward.1} parent=0 // pred_check
    _
  $region35: #{my_model_forward.1} parent=0 // pred_check_branch
    %3718 = sbr.rel (0) target = $region37
  $region36: #{my_model_forward.1} parent=0 // pred_region
    _
  $region37: #{my_model_forward.1} parent=0 // pred_fallthru
    _

</llo_original>
